<compile_context>
chip_gen: v6e
topology: v6e:2x2x1
jax: 0.10.0
libtpu: 0.0.40
codegen_flags: <defaults>
</compile_context>

<pallas_src>
import jax
import jax.numpy as jnp
from jax.experimental import pallas as pl
from jax.experimental.pallas import tpu as pltpu

# ---------------- model hyper-parameters (small, synthetic) ----------------
B = 2            # batch
S = 8            # sequence length
D = 32           # d_model
NHEAD = 4        # attention heads
DH = D // NHEAD  # head dim
DFF = 64         # feed-forward hidden dim
LN_EPS = 1e-5

# Row indices of the packed (9, 1, D) per-feature parameter table.
_BQ, _BK, _BV, _BO, _B2, _G2, _BE2, _G3, _BE3 = range(9)


def _layer_norm(x, gamma, beta):
    mu = jnp.mean(x, axis=-1, keepdims=True)
    xc = x - mu
    var = jnp.mean(xc * xc, axis=-1, keepdims=True)   # biased, matches PyTorch
    return xc * jax.lax.rsqrt(var + LN_EPS) * gamma + beta


def _decoder_layer_kernel(mem_ref, tgt_ref, pos_ref,
                          w_qkv_ref, wo_ref, w1_ref, w2_ref,
                          vec_ref, b1_ref, out_ref):
    mem = mem_ref[...]                       # (B*S, D) f32
    qk_in = mem + pos_ref[...]               # q = k = memory + m_pos
    v_in = mem + tgt_ref[...]                # v = memory + tgt

    qk_bf = qk_in.astype(jnp.bfloat16)
    v_bf = v_in.astype(jnp.bfloat16)

    # --- in-projections (weights pre-transposed on host: y = x @ W^T + b) ---
    q = jnp.dot(qk_bf, w_qkv_ref[0],
                preferred_element_type=jnp.float32) + vec_ref[_BQ]
    k = jnp.dot(qk_bf, w_qkv_ref[1],
                preferred_element_type=jnp.float32) + vec_ref[_BK]
    v = jnp.dot(v_bf, w_qkv_ref[2],
                preferred_element_type=jnp.float32) + vec_ref[_BV]

    scale = 1.0 / (DH ** 0.5)
    q3 = (q * scale).reshape(B, S, D)        # leading-dim split only (cheap)
    k3 = k.reshape(B, S, D)
    v3 = v.reshape(B, S, D)

    # --- multi-head attention: static head loop, batched-over-B einsums.
    # Each head's context is pushed straight through its rows of the output
    # projection and summed -> no concatenate / lane relayout.
    attn = None
    for h in range(NHEAD):
        lo = h * DH
        qh = q3[:, :, lo:lo + DH].astype(jnp.bfloat16)   # (B, S, DH)
        kh = k3[:, :, lo:lo + DH].astype(jnp.bfloat16)
        vh = v3[:, :, lo:lo + DH].astype(jnp.bfloat16)

        s = jnp.einsum('bqd,bkd->bqk', qh, kh,
                       preferred_element_type=jnp.float32)        # (B, S, S)
        s = s - jnp.max(s, axis=-1, keepdims=True)
        p = jnp.exp(s)
        p = p * pl.reciprocal(jnp.sum(p, axis=-1, keepdims=True), approx=True)

        ctx = jnp.einsum('bqk,bkd->bqd', p.astype(jnp.bfloat16), vh,
                         preferred_element_type=jnp.float32)      # (B, S, DH)
        contrib = jnp.dot(ctx.reshape(B * S, DH).astype(jnp.bfloat16),
                          wo_ref[h],                               # (DH, D)
                          preferred_element_type=jnp.float32)      # (B*S, D)
        attn = contrib if attn is None else attn + contrib
    attn = attn + vec_ref[_BO]               # out-projection bias

    # --- residual around v, LayerNorm2 ---
    x = v_in + attn
    x = _layer_norm(x, vec_ref[_G2], vec_ref[_BE2])

    # --- feed-forward (ReLU), residual, LayerNorm3 ---
    # TODO(synk): dropout / dropout2 / dropout3 omitted (eval-mode identity).
    h1 = jnp.dot(x.astype(jnp.bfloat16), w1_ref[...],
                 preferred_element_type=jnp.float32) + b1_ref[...]
    h1 = jnp.maximum(h1, 0.0)
    ff = jnp.dot(h1.astype(jnp.bfloat16), w2_ref[...],
                 preferred_element_type=jnp.float32) + vec_ref[_B2]
    x = x + ff
    x = _layer_norm(x, vec_ref[_G3], vec_ref[_BE3])

    out_ref[...] = x.astype(out_ref.dtype)


def decoder_layer_pallas(memory, tgt, m_pos, params):
    """memory, tgt, m_pos: (B, S, D) float32 -> (B, S, D) float32."""
    b, s, d = memory.shape
    bs = b * s
    args = (
        memory.reshape(bs, d).astype(jnp.float32),
        tgt.reshape(bs, d).astype(jnp.float32),
        m_pos.reshape(bs, d).astype(jnp.float32),
        params["w_qkv_t"],   # (3, D, D)   bf16, pre-transposed [Wq^T,Wk^T,Wv^T]
        params["wo_h_t"],    # (H, DH, D)  bf16, Wo^T split by head rows
        params["w1_t"],      # (D, DFF)    bf16
        params["w2_t"],      # (DFF, D)    bf16
        params["vecs"],      # (9, 1, D)   f32  packed biases + LN params
        params["b1"],        # (1, DFF)    f32
    )
    out = pl.pallas_call(
        _decoder_layer_kernel,
        out_shape=jax.ShapeDtypeStruct((bs, d), jnp.float32),
        in_specs=[pl.BlockSpec(memory_space=pltpu.MemorySpace.VMEM)
                  for _ in args],
        out_specs=pl.BlockSpec(memory_space=pltpu.MemorySpace.VMEM),
    )(*args)
    return out.reshape(b, s, d)


# ---------------- deterministic parameter construction ----------------
def make_params(key):
    ks = jax.random.split(key, 9)
    s_d = 1.0 / (D ** 0.5)
    s_ff = 1.0 / (DFF ** 0.5)
    # Raw PyTorch-layout weights.
    wq = jax.random.normal(ks[0], (D, D), jnp.float32) * s_d
    wk = jax.random.normal(ks[1], (D, D), jnp.float32) * s_d
    wv = jax.random.normal(ks[2], (D, D), jnp.float32) * s_d
    wo = jax.random.normal(ks[3], (D, D), jnp.float32) * s_d
    bq = jnp.zeros((D,), jnp.float32)
    bk = jnp.zeros((D,), jnp.float32)
    bv = jnp.zeros((D,), jnp.float32)
    bo = jax.random.normal(ks[4], (D,), jnp.float32) * 0.01
    w1 = jax.random.normal(ks[5], (DFF, D), jnp.float32) * s_d
    b1 = jax.random.normal(ks[6], (DFF,), jnp.float32) * 0.01
    w2 = jax.random.normal(ks[7], (D, DFF), jnp.float32) * s_ff
    b2 = jax.random.normal(ks[8], (D,), jnp.float32) * 0.01
    g2 = jnp.ones((D,), jnp.float32)
    be2 = jnp.zeros((D,), jnp.float32)
    g3 = jnp.ones((D,), jnp.float32)
    be3 = jnp.zeros((D,), jnp.float32)

    # Host-side pre-transpose + packing (MXU-ready layout, fewer DMAs).
    return {
        "w_qkv_t": jnp.stack([wq.T, wk.T, wv.T]).astype(jnp.bfloat16),
        "wo_h_t": wo.T.reshape(NHEAD, DH, D).astype(jnp.bfloat16),
        "w1_t": w1.T.astype(jnp.bfloat16),
        "w2_t": w2.T.astype(jnp.bfloat16),
        "vecs": jnp.stack([bq, bk, bv, bo, b2,
                           g2, be2, g3, be3]).reshape(9, 1, D),
        "b1": b1.reshape(1, DFF),
    }


if __name__ == "__main__":
    key = jax.random.PRNGKey(0)
    k_mem, k_tgt, k_pos, k_par = jax.random.split(key, 4)

    memory = jax.random.normal(k_mem, (B, S, D), jnp.float32)
    tgt = jax.random.normal(k_tgt, (B, S, D), jnp.float32)
    m_pos = jax.random.normal(k_pos, (B, S, D), jnp.float32)
    params = make_params(k_par)

    out = decoder_layer_pallas(memory, tgt, m_pos, params)
    out = jax.block_until_ready(out)

    assert out.shape == (B, S, D) and out.dtype == jnp.float32
    assert bool(jnp.all(jnp.isfinite(out)))
    print("KERNEL_OK")
</pallas_src>

<mosaic_0001>
module attributes {stable_mosaic.version = 11 : i64} {
  func.func @_decoder_layer_kernel(%arg0: memref<16x32xf32, #tpu.memory_space<vmem>>, %arg1: memref<16x32xf32, #tpu.memory_space<vmem>>, %arg2: memref<16x32xf32, #tpu.memory_space<vmem>>, %arg3: memref<3x32x32xbf16, #tpu.memory_space<vmem>>, %arg4: memref<4x8x32xbf16, #tpu.memory_space<vmem>>, %arg5: memref<32x64xbf16, #tpu.memory_space<vmem>>, %arg6: memref<64x32xbf16, #tpu.memory_space<vmem>>, %arg7: memref<9x1x32xf32, #tpu.memory_space<vmem>>, %arg8: memref<1x64xf32, #tpu.memory_space<vmem>>, %arg9: memref<16x32xf32, #tpu.memory_space<vmem>>) attributes {dimension_semantics = [], scalar_prefetch = 0 : i64, scratch_operands = 0 : i64, tpu.core_type = #tpu.core_type<tc>} {
    %c0 = arith.constant 0 : index
    %c0_0 = arith.constant 0 : index
    %0 = vector.load %arg0[%c0, %c0_0] : memref<16x32xf32, #tpu.memory_space<vmem>>, vector<16x32xf32>
    %c0_1 = arith.constant 0 : index
    %c0_2 = arith.constant 0 : index
    %1 = vector.load %arg2[%c0_1, %c0_2] : memref<16x32xf32, #tpu.memory_space<vmem>>, vector<16x32xf32>
    %2 = arith.addf %0, %1 : vector<16x32xf32>
    %c0_3 = arith.constant 0 : index
    %c0_4 = arith.constant 0 : index
    %3 = vector.load %arg1[%c0_3, %c0_4] : memref<16x32xf32, #tpu.memory_space<vmem>>, vector<16x32xf32>
    %4 = arith.addf %0, %3 : vector<16x32xf32>
    %5 = arith.truncf %2 : vector<16x32xf32> to vector<16x32xbf16>
    %6 = arith.truncf %4 : vector<16x32xf32> to vector<16x32xbf16>
    %c0_5 = arith.constant 0 : index
    %c0_6 = arith.constant 0 : index
    %c0_7 = arith.constant 0 : index
    %7 = vector.load %arg3[%c0_5, %c0_6, %c0_7] : memref<3x32x32xbf16, #tpu.memory_space<vmem>>, vector<1x32x32xbf16>
    %8 = vector.shape_cast %7 : vector<1x32x32xbf16> to vector<32x32xbf16>
    %cst = arith.constant dense<0.000000e+00> : vector<16x32xf32>
    %9 = tpu.matmul %5, %8, %cst {dimension_numbers = #tpu.dot_dimension_numbers<[1], [0], [0], [1], [0, 0, 1, 1], [], []>} : vector<16x32xbf16>, vector<32x32xbf16>, vector<16x32xf32> -> vector<16x32xf32>
    %c0_8 = arith.constant 0 : index
    %c0_9 = arith.constant 0 : index
    %c0_10 = arith.constant 0 : index
    %10 = vector.load %arg7[%c0_8, %c0_9, %c0_10] : memref<9x1x32xf32, #tpu.memory_space<vmem>>, vector<1x1x32xf32>
    %11 = vector.shape_cast %10 : vector<1x1x32xf32> to vector<1x32xf32>
    %12 = vector.broadcast %11 : vector<1x32xf32> to vector<16x32xf32>
    %13 = arith.addf %9, %12 : vector<16x32xf32>
    %c1 = arith.constant 1 : index
    %c0_11 = arith.constant 0 : index
    %c0_12 = arith.constant 0 : index
    %14 = vector.load %arg3[%c1, %c0_11, %c0_12] : memref<3x32x32xbf16, #tpu.memory_space<vmem>>, vector<1x32x32xbf16>
    %15 = vector.shape_cast %14 : vector<1x32x32xbf16> to vector<32x32xbf16>
    %cst_13 = arith.constant dense<0.000000e+00> : vector<16x32xf32>
    %16 = tpu.matmul %5, %15, %cst_13 {dimension_numbers = #tpu.dot_dimension_numbers<[1], [0], [0], [1], [0, 0, 1, 1], [], []>} : vector<16x32xbf16>, vector<32x32xbf16>, vector<16x32xf32> -> vector<16x32xf32>
    %c1_14 = arith.constant 1 : index
    %c0_15 = arith.constant 0 : index
    %c0_16 = arith.constant 0 : index
    %17 = vector.load %arg7[%c1_14, %c0_15, %c0_16] : memref<9x1x32xf32, #tpu.memory_space<vmem>>, vector<1x1x32xf32>
    %18 = vector.shape_cast %17 : vector<1x1x32xf32> to vector<1x32xf32>
    %19 = vector.broadcast %18 : vector<1x32xf32> to vector<16x32xf32>
    %20 = arith.addf %16, %19 : vector<16x32xf32>
    %c2 = arith.constant 2 : index
    %c0_17 = arith.constant 0 : index
    %c0_18 = arith.constant 0 : index
    %21 = vector.load %arg3[%c2, %c0_17, %c0_18] : memref<3x32x32xbf16, #tpu.memory_space<vmem>>, vector<1x32x32xbf16>
    %22 = vector.shape_cast %21 : vector<1x32x32xbf16> to vector<32x32xbf16>
    %cst_19 = arith.constant dense<0.000000e+00> : vector<16x32xf32>
    %23 = tpu.matmul %6, %22, %cst_19 {dimension_numbers = #tpu.dot_dimension_numbers<[1], [0], [0], [1], [0, 0, 1, 1], [], []>} : vector<16x32xbf16>, vector<32x32xbf16>, vector<16x32xf32> -> vector<16x32xf32>
    %c2_20 = arith.constant 2 : index
    %c0_21 = arith.constant 0 : index
    %c0_22 = arith.constant 0 : index
    %24 = vector.load %arg7[%c2_20, %c0_21, %c0_22] : memref<9x1x32xf32, #tpu.memory_space<vmem>>, vector<1x1x32xf32>
    %25 = vector.shape_cast %24 : vector<1x1x32xf32> to vector<1x32xf32>
    %26 = vector.broadcast %25 : vector<1x32xf32> to vector<16x32xf32>
    %27 = arith.addf %23, %26 : vector<16x32xf32>
    %cst_23 = arith.constant 0.353553385 : f32
    %28 = vector.broadcast %cst_23 : f32 to vector<16x32xf32>
    %29 = arith.mulf %13, %28 : vector<16x32xf32>
    %30 = vector.shape_cast %29 : vector<16x32xf32> to vector<2x8x32xf32>
    %31 = vector.shape_cast %20 : vector<16x32xf32> to vector<2x8x32xf32>
    %32 = vector.shape_cast %27 : vector<16x32xf32> to vector<2x8x32xf32>
    %33 = vector.extract_strided_slice %30 {offsets = [0, 0, 0], sizes = [2, 8, 8], strides = [1, 1, 1]} : vector<2x8x32xf32> to vector<2x8x8xf32>
    %34 = arith.truncf %33 : vector<2x8x8xf32> to vector<2x8x8xbf16>
    %35 = vector.extract_strided_slice %31 {offsets = [0, 0, 0], sizes = [2, 8, 8], strides = [1, 1, 1]} : vector<2x8x32xf32> to vector<2x8x8xf32>
    %36 = arith.truncf %35 : vector<2x8x8xf32> to vector<2x8x8xbf16>
    %37 = vector.extract_strided_slice %32 {offsets = [0, 0, 0], sizes = [2, 8, 8], strides = [1, 1, 1]} : vector<2x8x32xf32> to vector<2x8x8xf32>
    %38 = arith.truncf %37 : vector<2x8x8xf32> to vector<2x8x8xbf16>
    "tpu.trace_start"() <{level = 10 : i32, message = "bqd,bkd->bqk"}> : () -> ()
    %cst_24 = arith.constant dense<0.000000e+00> : vector<2x8x8xf32>
    %39 = tpu.matmul %34, %36, %cst_24 {dimension_numbers = #tpu.dot_dimension_numbers<[2], [2], [1], [1], [0, 0, 0, 1, 1, 1], [0], [0]>} : vector<2x8x8xbf16>, vector<2x8x8xbf16>, vector<2x8x8xf32> -> vector<2x8x8xf32>
    "tpu.trace_stop"() : () -> ()
    %cst_25 = arith.constant dense<0xFF800000> : vector<2x8xf32>
    %40 = vector.multi_reduction <maximumf>, %39, %cst_25 [2] : vector<2x8x8xf32> to vector<2x8xf32>
    %41 = vector.shape_cast %40 : vector<2x8xf32> to vector<2x8x1xf32>
    %42 = vector.broadcast %41 : vector<2x8x1xf32> to vector<2x8x8xf32>
    %43 = arith.subf %39, %42 : vector<2x8x8xf32>
    %44 = math.exp %43 : vector<2x8x8xf32>
    %cst_26 = arith.constant dense<0.000000e+00> : vector<2x8xf32>
    %45 = vector.multi_reduction <add>, %44, %cst_26 [2] : vector<2x8x8xf32> to vector<2x8xf32>
    %46 = vector.shape_cast %45 : vector<2x8xf32> to vector<2x8x1xf32>
    %47 = tpu.reciprocal %46 {approx = true} : vector<2x8x1xf32> -> vector<2x8x1xf32>
    %48 = vector.broadcast %47 : vector<2x8x1xf32> to vector<2x8x8xf32>
    %49 = arith.mulf %44, %48 : vector<2x8x8xf32>
    %50 = arith.truncf %49 : vector<2x8x8xf32> to vector<2x8x8xbf16>
    "tpu.trace_start"() <{level = 10 : i32, message = "bqk,bkd->bqd"}> : () -> ()
    %cst_27 = arith.constant dense<0.000000e+00> : vector<2x8x8xf32>
    %51 = tpu.matmul %50, %38, %cst_27 {dimension_numbers = #tpu.dot_dimension_numbers<[2], [1], [1], [2], [0, 0, 0, 1, 1, 2], [0], [0]>} : vector<2x8x8xbf16>, vector<2x8x8xbf16>, vector<2x8x8xf32> -> vector<2x8x8xf32>
    "tpu.trace_stop"() : () -> ()
    %52 = vector.shape_cast %51 : vector<2x8x8xf32> to vector<16x8xf32>
    %53 = arith.truncf %52 : vector<16x8xf32> to vector<16x8xbf16>
    %c0_28 = arith.constant 0 : index
    %c0_29 = arith.constant 0 : index
    %c0_30 = arith.constant 0 : index
    %54 = vector.load %arg4[%c0_28, %c0_29, %c0_30] : memref<4x8x32xbf16, #tpu.memory_space<vmem>>, vector<1x8x32xbf16>
    %55 = vector.shape_cast %54 : vector<1x8x32xbf16> to vector<8x32xbf16>
    %cst_31 = arith.constant dense<0.000000e+00> : vector<16x32xf32>
    %56 = tpu.matmul %53, %55, %cst_31 {dimension_numbers = #tpu.dot_dimension_numbers<[1], [0], [0], [1], [0, 0, 1, 1], [], []>} : vector<16x8xbf16>, vector<8x32xbf16>, vector<16x32xf32> -> vector<16x32xf32>
    %57 = vector.extract_strided_slice %30 {offsets = [0, 0, 8], sizes = [2, 8, 8], strides = [1, 1, 1]} : vector<2x8x32xf32> to vector<2x8x8xf32>
    %58 = arith.truncf %57 : vector<2x8x8xf32> to vector<2x8x8xbf16>
    %59 = vector.extract_strided_slice %31 {offsets = [0, 0, 8], sizes = [2, 8, 8], strides = [1, 1, 1]} : vector<2x8x32xf32> to vector<2x8x8xf32>
    %60 = arith.truncf %59 : vector<2x8x8xf32> to vector<2x8x8xbf16>
    %61 = vector.extract_strided_slice %32 {offsets = [0, 0, 8], sizes = [2, 8, 8], strides = [1, 1, 1]} : vector<2x8x32xf32> to vector<2x8x8xf32>
    %62 = arith.truncf %61 : vector<2x8x8xf32> to vector<2x8x8xbf16>
    "tpu.trace_start"() <{level = 10 : i32, message = "bqd,bkd->bqk"}> : () -> ()
    %cst_32 = arith.constant dense<0.000000e+00> : vector<2x8x8xf32>
    %63 = tpu.matmul %58, %60, %cst_32 {dimension_numbers = #tpu.dot_dimension_numbers<[2], [2], [1], [1], [0, 0, 0, 1, 1, 1], [0], [0]>} : vector<2x8x8xbf16>, vector<2x8x8xbf16>, vector<2x8x8xf32> -> vector<2x8x8xf32>
    "tpu.trace_stop"() : () -> ()
    %cst_33 = arith.constant dense<0xFF800000> : vector<2x8xf32>
    %64 = vector.multi_reduction <maximumf>, %63, %cst_33 [2] : vector<2x8x8xf32> to vector<2x8xf32>
    %65 = vector.shape_cast %64 : vector<2x8xf32> to vector<2x8x1xf32>
    %66 = vector.broadcast %65 : vector<2x8x1xf32> to vector<2x8x8xf32>
    %67 = arith.subf %63, %66 : vector<2x8x8xf32>
    %68 = math.exp %67 : vector<2x8x8xf32>
    %cst_34 = arith.constant dense<0.000000e+00> : vector<2x8xf32>
    %69 = vector.multi_reduction <add>, %68, %cst_34 [2] : vector<2x8x8xf32> to vector<2x8xf32>
    %70 = vector.shape_cast %69 : vector<2x8xf32> to vector<2x8x1xf32>
    %71 = tpu.reciprocal %70 {approx = true} : vector<2x8x1xf32> -> vector<2x8x1xf32>
    %72 = vector.broadcast %71 : vector<2x8x1xf32> to vector<2x8x8xf32>
    %73 = arith.mulf %68, %72 : vector<2x8x8xf32>
    %74 = arith.truncf %73 : vector<2x8x8xf32> to vector<2x8x8xbf16>
    "tpu.trace_start"() <{level = 10 : i32, message = "bqk,bkd->bqd"}> : () -> ()
    %cst_35 = arith.constant dense<0.000000e+00> : vector<2x8x8xf32>
    %75 = tpu.matmul %74, %62, %cst_35 {dimension_numbers = #tpu.dot_dimension_numbers<[2], [1], [1], [2], [0, 0, 0, 1, 1, 2], [0], [0]>} : vector<2x8x8xbf16>, vector<2x8x8xbf16>, vector<2x8x8xf32> -> vector<2x8x8xf32>
    "tpu.trace_stop"() : () -> ()
    %76 = vector.shape_cast %75 : vector<2x8x8xf32> to vector<16x8xf32>
    %77 = arith.truncf %76 : vector<16x8xf32> to vector<16x8xbf16>
    %c1_36 = arith.constant 1 : index
    %c0_37 = arith.constant 0 : index
    %c0_38 = arith.constant 0 : index
    %78 = vector.load %arg4[%c1_36, %c0_37, %c0_38] : memref<4x8x32xbf16, #tpu.memory_space<vmem>>, vector<1x8x32xbf16>
    %79 = vector.shape_cast %78 : vector<1x8x32xbf16> to vector<8x32xbf16>
    %cst_39 = arith.constant dense<0.000000e+00> : vector<16x32xf32>
    %80 = tpu.matmul %77, %79, %cst_39 {dimension_numbers = #tpu.dot_dimension_numbers<[1], [0], [0], [1], [0, 0, 1, 1], [], []>} : vector<16x8xbf16>, vector<8x32xbf16>, vector<16x32xf32> -> vector<16x32xf32>
    %81 = arith.addf %56, %80 : vector<16x32xf32>
    %82 = vector.extract_strided_slice %30 {offsets = [0, 0, 16], sizes = [2, 8, 8], strides = [1, 1, 1]} : vector<2x8x32xf32> to vector<2x8x8xf32>
    %83 = arith.truncf %82 : vector<2x8x8xf32> to vector<2x8x8xbf16>
    %84 = vector.extract_strided_slice %31 {offsets = [0, 0, 16], sizes = [2, 8, 8], strides = [1, 1, 1]} : vector<2x8x32xf32> to vector<2x8x8xf32>
    %85 = arith.truncf %84 : vector<2x8x8xf32> to vector<2x8x8xbf16>
    %86 = vector.extract_strided_slice %32 {offsets = [0, 0, 16], sizes = [2, 8, 8], strides = [1, 1, 1]} : vector<2x8x32xf32> to vector<2x8x8xf32>
    %87 = arith.truncf %86 : vector<2x8x8xf32> to vector<2x8x8xbf16>
    "tpu.trace_start"() <{level = 10 : i32, message = "bqd,bkd->bqk"}> : () -> ()
    %cst_40 = arith.constant dense<0.000000e+00> : vector<2x8x8xf32>
    %88 = tpu.matmul %83, %85, %cst_40 {dimension_numbers = #tpu.dot_dimension_numbers<[2], [2], [1], [1], [0, 0, 0, 1, 1, 1], [0], [0]>} : vector<2x8x8xbf16>, vector<2x8x8xbf16>, vector<2x8x8xf32> -> vector<2x8x8xf32>
    "tpu.trace_stop"() : () -> ()
    %cst_41 = arith.constant dense<0xFF800000> : vector<2x8xf32>
    %89 = vector.multi_reduction <maximumf>, %88, %cst_41 [2] : vector<2x8x8xf32> to vector<2x8xf32>
    %90 = vector.shape_cast %89 : vector<2x8xf32> to vector<2x8x1xf32>
    %91 = vector.broadcast %90 : vector<2x8x1xf32> to vector<2x8x8xf32>
    %92 = arith.subf %88, %91 : vector<2x8x8xf32>
    %93 = math.exp %92 : vector<2x8x8xf32>
    %cst_42 = arith.constant dense<0.000000e+00> : vector<2x8xf32>
    %94 = vector.multi_reduction <add>, %93, %cst_42 [2] : vector<2x8x8xf32> to vector<2x8xf32>
    %95 = vector.shape_cast %94 : vector<2x8xf32> to vector<2x8x1xf32>
    %96 = tpu.reciprocal %95 {approx = true} : vector<2x8x1xf32> -> vector<2x8x1xf32>
    %97 = vector.broadcast %96 : vector<2x8x1xf32> to vector<2x8x8xf32>
    %98 = arith.mulf %93, %97 : vector<2x8x8xf32>
    %99 = arith.truncf %98 : vector<2x8x8xf32> to vector<2x8x8xbf16>
    "tpu.trace_start"() <{level = 10 : i32, message = "bqk,bkd->bqd"}> : () -> ()
    %cst_43 = arith.constant dense<0.000000e+00> : vector<2x8x8xf32>
    %100 = tpu.matmul %99, %87, %cst_43 {dimension_numbers = #tpu.dot_dimension_numbers<[2], [1], [1], [2], [0, 0, 0, 1, 1, 2], [0], [0]>} : vector<2x8x8xbf16>, vector<2x8x8xbf16>, vector<2x8x8xf32> -> vector<2x8x8xf32>
    "tpu.trace_stop"() : () -> ()
    %101 = vector.shape_cast %100 : vector<2x8x8xf32> to vector<16x8xf32>
    %102 = arith.truncf %101 : vector<16x8xf32> to vector<16x8xbf16>
    %c2_44 = arith.constant 2 : index
    %c0_45 = arith.constant 0 : index
    %c0_46 = arith.constant 0 : index
    %103 = vector.load %arg4[%c2_44, %c0_45, %c0_46] : memref<4x8x32xbf16, #tpu.memory_space<vmem>>, vector<1x8x32xbf16>
    %104 = vector.shape_cast %103 : vector<1x8x32xbf16> to vector<8x32xbf16>
    %cst_47 = arith.constant dense<0.000000e+00> : vector<16x32xf32>
    %105 = tpu.matmul %102, %104, %cst_47 {dimension_numbers = #tpu.dot_dimension_numbers<[1], [0], [0], [1], [0, 0, 1, 1], [], []>} : vector<16x8xbf16>, vector<8x32xbf16>, vector<16x32xf32> -> vector<16x32xf32>
    %106 = arith.addf %81, %105 : vector<16x32xf32>
    %107 = vector.extract_strided_slice %30 {offsets = [0, 0, 24], sizes = [2, 8, 8], strides = [1, 1, 1]} : vector<2x8x32xf32> to vector<2x8x8xf32>
    %108 = arith.truncf %107 : vector<2x8x8xf32> to vector<2x8x8xbf16>
    %109 = vector.extract_strided_slice %31 {offsets = [0, 0, 24], sizes = [2, 8, 8], strides = [1, 1, 1]} : vector<2x8x32xf32> to vector<2x8x8xf32>
    %110 = arith.truncf %109 : vector<2x8x8xf32> to vector<2x8x8xbf16>
    %111 = vector.extract_strided_slice %32 {offsets = [0, 0, 24], sizes = [2, 8, 8], strides = [1, 1, 1]} : vector<2x8x32xf32> to vector<2x8x8xf32>
    %112 = arith.truncf %111 : vector<2x8x8xf32> to vector<2x8x8xbf16>
    "tpu.trace_start"() <{level = 10 : i32, message = "bqd,bkd->bqk"}> : () -> ()
    %cst_48 = arith.constant dense<0.000000e+00> : vector<2x8x8xf32>
    %113 = tpu.matmul %108, %110, %cst_48 {dimension_numbers = #tpu.dot_dimension_numbers<[2], [2], [1], [1], [0, 0, 0, 1, 1, 1], [0], [0]>} : vector<2x8x8xbf16>, vector<2x8x8xbf16>, vector<2x8x8xf32> -> vector<2x8x8xf32>
    "tpu.trace_stop"() : () -> ()
    %cst_49 = arith.constant dense<0xFF800000> : vector<2x8xf32>
    %114 = vector.multi_reduction <maximumf>, %113, %cst_49 [2] : vector<2x8x8xf32> to vector<2x8xf32>
    %115 = vector.shape_cast %114 : vector<2x8xf32> to vector<2x8x1xf32>
    %116 = vector.broadcast %115 : vector<2x8x1xf32> to vector<2x8x8xf32>
    %117 = arith.subf %113, %116 : vector<2x8x8xf32>
    %118 = math.exp %117 : vector<2x8x8xf32>
    %cst_50 = arith.constant dense<0.000000e+00> : vector<2x8xf32>
    %119 = vector.multi_reduction <add>, %118, %cst_50 [2] : vector<2x8x8xf32> to vector<2x8xf32>
    %120 = vector.shape_cast %119 : vector<2x8xf32> to vector<2x8x1xf32>
    %121 = tpu.reciprocal %120 {approx = true} : vector<2x8x1xf32> -> vector<2x8x1xf32>
    %122 = vector.broadcast %121 : vector<2x8x1xf32> to vector<2x8x8xf32>
    %123 = arith.mulf %118, %122 : vector<2x8x8xf32>
    %124 = arith.truncf %123 : vector<2x8x8xf32> to vector<2x8x8xbf16>
    "tpu.trace_start"() <{level = 10 : i32, message = "bqk,bkd->bqd"}> : () -> ()
    %cst_51 = arith.constant dense<0.000000e+00> : vector<2x8x8xf32>
    %125 = tpu.matmul %124, %112, %cst_51 {dimension_numbers = #tpu.dot_dimension_numbers<[2], [1], [1], [2], [0, 0, 0, 1, 1, 2], [0], [0]>} : vector<2x8x8xbf16>, vector<2x8x8xbf16>, vector<2x8x8xf32> -> vector<2x8x8xf32>
    "tpu.trace_stop"() : () -> ()
    %126 = vector.shape_cast %125 : vector<2x8x8xf32> to vector<16x8xf32>
    %127 = arith.truncf %126 : vector<16x8xf32> to vector<16x8xbf16>
    %c3 = arith.constant 3 : index
    %c0_52 = arith.constant 0 : index
    %c0_53 = arith.constant 0 : index
    %128 = vector.load %arg4[%c3, %c0_52, %c0_53] : memref<4x8x32xbf16, #tpu.memory_space<vmem>>, vector<1x8x32xbf16>
    %129 = vector.shape_cast %128 : vector<1x8x32xbf16> to vector<8x32xbf16>
    %cst_54 = arith.constant dense<0.000000e+00> : vector<16x32xf32>
    %130 = tpu.matmul %127, %129, %cst_54 {dimension_numbers = #tpu.dot_dimension_numbers<[1], [0], [0], [1], [0, 0, 1, 1], [], []>} : vector<16x8xbf16>, vector<8x32xbf16>, vector<16x32xf32> -> vector<16x32xf32>
    %131 = arith.addf %106, %130 : vector<16x32xf32>
    %c3_55 = arith.constant 3 : index
    %c0_56 = arith.constant 0 : index
    %c0_57 = arith.constant 0 : index
    %132 = vector.load %arg7[%c3_55, %c0_56, %c0_57] : memref<9x1x32xf32, #tpu.memory_space<vmem>>, vector<1x1x32xf32>
    %133 = vector.shape_cast %132 : vector<1x1x32xf32> to vector<1x32xf32>
    %134 = vector.broadcast %133 : vector<1x32xf32> to vector<16x32xf32>
    %135 = arith.addf %131, %134 : vector<16x32xf32>
    %136 = arith.addf %4, %135 : vector<16x32xf32>
    %c5 = arith.constant 5 : index
    %c0_58 = arith.constant 0 : index
    %c0_59 = arith.constant 0 : index
    %137 = vector.load %arg7[%c5, %c0_58, %c0_59] : memref<9x1x32xf32, #tpu.memory_space<vmem>>, vector<1x1x32xf32>
    %138 = vector.shape_cast %137 : vector<1x1x32xf32> to vector<1x32xf32>
    %c6 = arith.constant 6 : index
    %c0_60 = arith.constant 0 : index
    %c0_61 = arith.constant 0 : index
    %139 = vector.load %arg7[%c6, %c0_60, %c0_61] : memref<9x1x32xf32, #tpu.memory_space<vmem>>, vector<1x1x32xf32>
    %140 = vector.shape_cast %139 : vector<1x1x32xf32> to vector<1x32xf32>
    %cst_62 = arith.constant dense<0.000000e+00> : vector<16xf32>
    %141 = vector.multi_reduction <add>, %136, %cst_62 [1] : vector<16x32xf32> to vector<16xf32>
    %142 = vector.shape_cast %141 : vector<16xf32> to vector<16x1xf32>
    %cst_63 = arith.constant 3.200000e+01 : f32
    %143 = vector.broadcast %cst_63 : f32 to vector<16x1xf32>
    %144 = arith.divf %142, %143 : vector<16x1xf32>
    %145 = vector.broadcast %144 : vector<16x1xf32> to vector<16x32xf32>
    %146 = arith.subf %136, %145 : vector<16x32xf32>
    %147 = arith.mulf %146, %146 : vector<16x32xf32>
    %cst_64 = arith.constant dense<0.000000e+00> : vector<16xf32>
    %148 = vector.multi_reduction <add>, %147, %cst_64 [1] : vector<16x32xf32> to vector<16xf32>
    %149 = vector.shape_cast %148 : vector<16xf32> to vector<16x1xf32>
    %cst_65 = arith.constant 3.200000e+01 : f32
    %150 = vector.broadcast %cst_65 : f32 to vector<16x1xf32>
    %151 = arith.divf %149, %150 : vector<16x1xf32>
    %cst_66 = arith.constant 9.99999974E-6 : f32
    %152 = vector.broadcast %cst_66 : f32 to vector<16x1xf32>
    %153 = arith.addf %151, %152 : vector<16x1xf32>
    %154 = math.rsqrt %153 : vector<16x1xf32>
    %155 = vector.broadcast %154 : vector<16x1xf32> to vector<16x32xf32>
    %156 = arith.mulf %146, %155 : vector<16x32xf32>
    %157 = vector.broadcast %138 : vector<1x32xf32> to vector<16x32xf32>
    %158 = arith.mulf %156, %157 : vector<16x32xf32>
    %159 = vector.broadcast %140 : vector<1x32xf32> to vector<16x32xf32>
    %160 = arith.addf %158, %159 : vector<16x32xf32>
    %161 = arith.truncf %160 : vector<16x32xf32> to vector<16x32xbf16>
    %c0_67 = arith.constant 0 : index
    %c0_68 = arith.constant 0 : index
    %162 = vector.load %arg5[%c0_67, %c0_68] : memref<32x64xbf16, #tpu.memory_space<vmem>>, vector<32x64xbf16>
    %cst_69 = arith.constant dense<0.000000e+00> : vector<16x64xf32>
    %163 = tpu.matmul %161, %162, %cst_69 {dimension_numbers = #tpu.dot_dimension_numbers<[1], [0], [0], [1], [0, 0, 1, 1], [], []>} : vector<16x32xbf16>, vector<32x64xbf16>, vector<16x64xf32> -> vector<16x64xf32>
    %c0_70 = arith.constant 0 : index
    %c0_71 = arith.constant 0 : index
    %164 = vector.load %arg8[%c0_70, %c0_71] : memref<1x64xf32, #tpu.memory_space<vmem>>, vector<1x64xf32>
    %165 = vector.broadcast %164 : vector<1x64xf32> to vector<16x64xf32>
    %166 = arith.addf %163, %165 : vector<16x64xf32>
    %cst_72 = arith.constant 0.000000e+00 : f32
    %167 = vector.broadcast %cst_72 : f32 to vector<16x64xf32>
    %168 = arith.maximumf %166, %167 : vector<16x64xf32>
    %169 = arith.truncf %168 : vector<16x64xf32> to vector<16x64xbf16>
    %c0_73 = arith.constant 0 : index
    %c0_74 = arith.constant 0 : index
    %170 = vector.load %arg6[%c0_73, %c0_74] : memref<64x32xbf16, #tpu.memory_space<vmem>>, vector<64x32xbf16>
    %cst_75 = arith.constant dense<0.000000e+00> : vector<16x32xf32>
    %171 = tpu.matmul %169, %170, %cst_75 {dimension_numbers = #tpu.dot_dimension_numbers<[1], [0], [0], [1], [0, 0, 1, 1], [], []>} : vector<16x64xbf16>, vector<64x32xbf16>, vector<16x32xf32> -> vector<16x32xf32>
    %c4 = arith.constant 4 : index
    %c0_76 = arith.constant 0 : index
    %c0_77 = arith.constant 0 : index
    %172 = vector.load %arg7[%c4, %c0_76, %c0_77] : memref<9x1x32xf32, #tpu.memory_space<vmem>>, vector<1x1x32xf32>
    %173 = vector.shape_cast %172 : vector<1x1x32xf32> to vector<1x32xf32>
    %174 = vector.broadcast %173 : vector<1x32xf32> to vector<16x32xf32>
    %175 = arith.addf %171, %174 : vector<16x32xf32>
    %176 = arith.addf %160, %175 : vector<16x32xf32>
    %c7 = arith.constant 7 : index
    %c0_78 = arith.constant 0 : index
    %c0_79 = arith.constant 0 : index
    %177 = vector.load %arg7[%c7, %c0_78, %c0_79] : memref<9x1x32xf32, #tpu.memory_space<vmem>>, vector<1x1x32xf32>
    %178 = vector.shape_cast %177 : vector<1x1x32xf32> to vector<1x32xf32>
    %c8 = arith.constant 8 : index
    %c0_80 = arith.constant 0 : index
    %c0_81 = arith.constant 0 : index
    %179 = vector.load %arg7[%c8, %c0_80, %c0_81] : memref<9x1x32xf32, #tpu.memory_space<vmem>>, vector<1x1x32xf32>
    %180 = vector.shape_cast %179 : vector<1x1x32xf32> to vector<1x32xf32>
    %cst_82 = arith.constant dense<0.000000e+00> : vector<16xf32>
    %181 = vector.multi_reduction <add>, %176, %cst_82 [1] : vector<16x32xf32> to vector<16xf32>
    %182 = vector.shape_cast %181 : vector<16xf32> to vector<16x1xf32>
    %cst_83 = arith.constant 3.200000e+01 : f32
    %183 = vector.broadcast %cst_83 : f32 to vector<16x1xf32>
    %184 = arith.divf %182, %183 : vector<16x1xf32>
    %185 = vector.broadcast %184 : vector<16x1xf32> to vector<16x32xf32>
    %186 = arith.subf %176, %185 : vector<16x32xf32>
    %187 = arith.mulf %186, %186 : vector<16x32xf32>
    %cst_84 = arith.constant dense<0.000000e+00> : vector<16xf32>
    %188 = vector.multi_reduction <add>, %187, %cst_84 [1] : vector<16x32xf32> to vector<16xf32>
    %189 = vector.shape_cast %188 : vector<16xf32> to vector<16x1xf32>
    %cst_85 = arith.constant 3.200000e+01 : f32
    %190 = vector.broadcast %cst_85 : f32 to vector<16x1xf32>
    %191 = arith.divf %189, %190 : vector<16x1xf32>
    %cst_86 = arith.constant 9.99999974E-6 : f32
    %192 = vector.broadcast %cst_86 : f32 to vector<16x1xf32>
    %193 = arith.addf %191, %192 : vector<16x1xf32>
    %194 = math.rsqrt %193 : vector<16x1xf32>
    %195 = vector.broadcast %194 : vector<16x1xf32> to vector<16x32xf32>
    %196 = arith.mulf %186, %195 : vector<16x32xf32>
    %197 = vector.broadcast %178 : vector<1x32xf32> to vector<16x32xf32>
    %198 = arith.mulf %196, %197 : vector<16x32xf32>
    %199 = vector.broadcast %180 : vector<1x32xf32> to vector<16x32xf32>
    %200 = arith.addf %198, %199 : vector<16x32xf32>
    %c0_87 = arith.constant 0 : index
    %c0_88 = arith.constant 0 : index
    %201 = vector.load %arg9[%c0_87, %c0_88] : memref<16x32xf32, #tpu.memory_space<vmem>>, vector<16x32xf32>
    tpu.vector_store %arg9[%c0_87, %c0_88], %200 {strides = array<i32>} : memref<16x32xf32, #tpu.memory_space<vmem>>, vector<16x32xf32>,
    return
  }
}

</mosaic_0001>

<llo_original>
// kernel: tpu_custom_call.1
$region0: #{tpu_custom_call.1}
  #allocation0 [shape = 'u32[]', space=smem, size = 0x4, offset = 0x4, fixed_abs, tag = 'smem constant byte address 0x4 - core index']
  #allocation1 [shape = 'u32[144,128]{1,0:T(1,128)}', space=vmem, size = 0x12000, scoped, tag = 'internal scratch']
  %s0 = inlined_call_operand.hbm [shape: f32[16,32], index: 0, kind: input, shape index: {}]
  %s1 = inlined_call_operand.hbm [shape: f32[16,32], index: 1, kind: input, shape index: {}]
  %s2 = inlined_call_operand.hbm [shape: f32[16,32], index: 2, kind: input, shape index: {}]
  %s3 = inlined_call_operand.vmem [shape: bf16[3,32,32], index: 3, kind: input, shape index: {}]
  %s4 = inlined_call_operand.hbm [shape: bf16[4,8,32], index: 4, kind: input, shape index: {}]
  %s5 = inlined_call_operand.hbm [shape: bf16[32,64], index: 5, kind: input, shape index: {}]
  %s6 = inlined_call_operand.vmem [shape: bf16[64,32], index: 6, kind: input, shape index: {}]
  %s7 = inlined_call_operand.vmem [shape: f32[9,1,32], index: 7, kind: input, shape index: {}]
  %s8 = inlined_call_operand.vmem [shape: f32[1,64], index: 8, kind: input, shape index: {}]
  %s9 = inlined_call_operand.hbm [shape: f32[16,32], index: 9, kind: output, shape index: {}]
  %s10 = sld [smem:[#allocation0]]
  $region66: #{tpu_custom_call.1} parent=0
    _
  %s12 = ssub.s32 1, %s10
  %s13 = scalar_select 0, %s12, %s10
  $region1: #{tpu_custom_call.1} parent=0
    #allocation2 [shape = 'u8[8192]{0}', space=vmem, size = 0x2000, scoped, tag = 'input window, operand 0, single buffered']
    #allocation3 [shape = 's32[1]{0}', space=sflag, size = 0x4, scoped, tag = 'scoped memory for tpu_custom_call.1']
    #allocation4 [shape = 's32[1]{0}', space=sflag, size = 0x4, scoped, tag = 'scoped memory for tpu_custom_call.1']
    #allocation5 [shape = 'u8[8192]{0}', space=vmem, size = 0x2000, scoped, tag = 'input window, operand 1, single buffered']
    #allocation6 [shape = 's32[1]{0}', space=sflag, size = 0x4, scoped, tag = 'scoped memory for tpu_custom_call.1']
    #allocation7 [shape = 'u8[8192]{0}', space=vmem, size = 0x2000, scoped, tag = 'input window, operand 2, single buffered']
    #allocation8 [shape = 'u8[8192]{0}', space=vmem, size = 0x2000, scoped, tag = 'input window, operand 4, single buffered']
    #allocation9 [shape = 's32[1]{0}', space=sflag, size = 0x4, scoped, tag = 'scoped memory for tpu_custom_call.1']
    #allocation10 [shape = 'u8[8192]{0}', space=vmem, size = 0x2000, scoped, tag = 'input window, operand 5, single buffered']
    #allocation11 [shape = 'u8[8192]{0}', space=vmem, size = 0x2000, scoped, tag = 'output window, operand 0, single buffered']
    %14 = vsyncpa [#allocation3], 0
    %15 = vsyncpa [#allocation6], 0
    %16 = vsyncpa [#allocation9], 0
    %17 = vsyncpa [#allocation4], 0
    // Predicated region
    $region2: #{tpu_custom_call.1} parent=1 // pred_check
      _
    $region3: #{tpu_custom_call.1} parent=1 // pred_check_branch
      %19 = sbr.rel (0) target = $region5
    $region4: #{tpu_custom_call.1} parent=1 // pred_region
      %s21 = ssub.s32 256, 256
      %22 = vsyncadd [#allocation3], %s21
      %s23 = sshll.u32 [#allocation2], 4
      %s24 = int_to_ptr.vmem [resolvable:$true] %s23
      %29 = dma.hbm_to_vmem [thread:$0]  %s0, 256, %s24, [#allocation3], 128, 128, 8
    $region5: #{tpu_custom_call.1} parent=1 // pred_fallthru
      _
    // Predicated region
    $region6: #{tpu_custom_call.1} parent=1 // pred_check
      _
    $region7: #{tpu_custom_call.1} parent=1 // pred_check_branch
      %31 = sbr.rel (0) target = $region9
    $region8: #{tpu_custom_call.1} parent=1 // pred_region
      %s33 = ssub.s32 256, 256
      %34 = vsyncadd [#allocation6], %s33
      %s35 = sshll.u32 [#allocation5], 4
      %s36 = int_to_ptr.vmem [resolvable:$true] %s35
      %41 = dma.hbm_to_vmem [thread:$0]  %s1, 256, %s36, [#allocation6], 128, 128, 8
    $region9: #{tpu_custom_call.1} parent=1 // pred_fallthru
      _
    // Predicated region
    $region10: #{tpu_custom_call.1} parent=1 // pred_check
      _
    $region11: #{tpu_custom_call.1} parent=1 // pred_check_branch
      %43 = sbr.rel (0) target = $region13
    $region12: #{tpu_custom_call.1} parent=1 // pred_region
      %s45 = ssub.s32 256, 256
      %46 = vsyncadd [#allocation6], %s45
      %s47 = sshll.u32 [#allocation7], 4
      %s48 = int_to_ptr.vmem [resolvable:$true] %s47
      %53 = dma.hbm_to_vmem [thread:$0]  %s2, 256, %s48, [#allocation6], 128, 128, 8
    $region13: #{tpu_custom_call.1} parent=1 // pred_fallthru
      _
    // Predicated region
    $region14: #{tpu_custom_call.1} parent=1 // pred_check
      _
    $region15: #{tpu_custom_call.1} parent=1 // pred_check_branch
      %55 = sbr.rel (0) target = $region17
    $region16: #{tpu_custom_call.1} parent=1 // pred_region
      _
    $region17: #{tpu_custom_call.1} parent=1 // pred_fallthru
      _
    // Predicated region
    $region18: #{tpu_custom_call.1} parent=1 // pred_check
      _
    $region19: #{tpu_custom_call.1} parent=1 // pred_check_branch
      %57 = sbr.rel (0) target = $region21
    $region20: #{tpu_custom_call.1} parent=1 // pred_region
      %s59 = ssub.s32 256, 256
      %60 = vsyncadd [#allocation9], %s59
      %s61 = sshll.u32 [#allocation8], 4
      %s62 = int_to_ptr.vmem [resolvable:$true] %s61
      %67 = dma.hbm_to_vmem [thread:$0]  %s4, 256, %s62, [#allocation9], 64, 64, 4
    $region21: #{tpu_custom_call.1} parent=1 // pred_fallthru
      _
    // Predicated region
    $region22: #{tpu_custom_call.1} parent=1 // pred_check
      _
    $region23: #{tpu_custom_call.1} parent=1 // pred_check_branch
      %69 = sbr.rel (0) target = $region25
    $region24: #{tpu_custom_call.1} parent=1 // pred_region
      %s71 = ssub.s32 256, 256
      %72 = vsyncadd [#allocation9], %s71
      %s73 = sshll.u32 [#allocation10], 4
      %s74 = int_to_ptr.vmem [resolvable:$true] %s73
      %79 = dma.hbm_to_vmem [thread:$0]  %s5, 256, %s74, [#allocation9], 64, 64, 4
    $region25: #{tpu_custom_call.1} parent=1 // pred_fallthru
      _
    // Predicated region
    $region26: #{tpu_custom_call.1} parent=1 // pred_check
      _
    $region27: #{tpu_custom_call.1} parent=1 // pred_check_branch
      %81 = sbr.rel (0) target = $region29
    $region28: #{tpu_custom_call.1} parent=1 // pred_region
      _
    $region29: #{tpu_custom_call.1} parent=1 // pred_fallthru
      _
    // Predicated region
    $region30: #{tpu_custom_call.1} parent=1 // pred_check
      _
    $region31: #{tpu_custom_call.1} parent=1 // pred_check_branch
      %83 = sbr.rel (0) target = $region33
    $region32: #{tpu_custom_call.1} parent=1 // pred_region
      _
    $region33: #{tpu_custom_call.1} parent=1 // pred_fallthru
      _
    // Predicated region
    $region34: #{tpu_custom_call.1} parent=1 // pred_check
      _
    $region35: #{tpu_custom_call.1} parent=1 // pred_check_branch
      %85 = sbr.rel (0) target = $region37
    $region36: #{tpu_custom_call.1} parent=1 // pred_region
      _
    $region37: #{tpu_custom_call.1} parent=1 // pred_fallthru
      _
    // Predicated region
    $region38: #{tpu_custom_call.1} parent=1 // pred_check
      _
    $region39: #{tpu_custom_call.1} parent=1 // pred_check_branch
      %87 = sbr.rel (0) target = $region41
    $region40: #{tpu_custom_call.1} parent=1 // pred_region
      %88 = dma.done [#allocation3], 256
    $region41: #{tpu_custom_call.1} parent=1 // pred_fallthru
      _
    // Predicated region
    $region42: #{tpu_custom_call.1} parent=1 // pred_check
      _
    $region43: #{tpu_custom_call.1} parent=1 // pred_check_branch
      %90 = sbr.rel (0) target = $region45
    $region44: #{tpu_custom_call.1} parent=1 // pred_region
      %91 = dma.done [#allocation6], 256
    $region45: #{tpu_custom_call.1} parent=1 // pred_fallthru
      _
    // Predicated region
    $region46: #{tpu_custom_call.1} parent=1 // pred_check
      _
    $region47: #{tpu_custom_call.1} parent=1 // pred_check_branch
      %93 = sbr.rel (0) target = $region49
    $region48: #{tpu_custom_call.1} parent=1 // pred_region
      %94 = dma.done [#allocation6], 256
    $region49: #{tpu_custom_call.1} parent=1 // pred_fallthru
      _
    // Predicated region
    $region50: #{tpu_custom_call.1} parent=1 // pred_check
      _
    $region51: #{tpu_custom_call.1} parent=1 // pred_check_branch
      %96 = sbr.rel (0) target = $region53
    $region52: #{tpu_custom_call.1} parent=1 // pred_region
      %97 = dma.done [#allocation9], 256
    $region53: #{tpu_custom_call.1} parent=1 // pred_fallthru
      _
    // Predicated region
    $region54: #{tpu_custom_call.1} parent=1 // pred_check
      _
    $region55: #{tpu_custom_call.1} parent=1 // pred_check_branch
      %99 = sbr.rel (0) target = $region57
    $region56: #{tpu_custom_call.1} parent=1 // pred_region
      %100 = dma.done [#allocation9], 256
    $region57: #{tpu_custom_call.1} parent=1 // pred_fallthru
      _
    %v102 = vld [vmem:[#allocation2] sm:$0xff]
    %v103 = vld [vmem:[#allocation2 + $0x8] sm:$0xff]
    %v104 = vld [vmem:[#allocation7] sm:$0xff]
    %v105 = vld [vmem:[#allocation7 + $0x8] sm:$0xff]
    %v106 = vadd.f32 %v102, %v104
    %v107 = vadd.f32 %v103, %v105
    %v108 = vld [vmem:[#allocation5] sm:$0xff]
    %v109 = vld [vmem:[#allocation5 + $0x8] sm:$0xff]
    %v110 = vadd.f32 %v102, %v108
    %v111 = vadd.f32 %v103, %v109
    %v112 = vpack.c.bf16 %v107, %v106
    %v113 = vpack.c.bf16 %v111, %v110
    %v114 = vld [vmem:[%s3] sm:$0xf]
    %v115 = vld [vmem:[%s3 + $0x4] sm:$0xf]
    %v116 = vld [vmem:[%s3 + $0x8] sm:$0xf]
    %v117 = vld [vmem:[%s3 + $0xc] sm:$0xf]
    %v118 = vld [vmem:[%s7] sm:$0x1]
    %v120 = vlaneseq
    %v121 = vshrl.u32 %v120, 7
    %v122 = vsub.s32 0, %v121
    %v123 = vrot.slane %v118, %v122
    %v129 = vunpack.c.l.b16 %v114
    %v130 = vunpack.c.l.b16 %v115
    %v131 = vunpack.c.l.b16 %v116
    %v132 = vunpack.c.l.b16 %v117
    %v133 = vpack.c.b16 %v130, %v129
    %v134 = vpack.c.b16 %v132, %v131
    %vm137 = vcmask 261120
    %v139 = vsel %vm137, %v112, 0
    %141 = vmatprep.subr.bf16.mxu0 0
    %142 = vmatpush1.bf16.msra.mxu0 0
    %143 = vmatprep.subr.bf16.mxu0 0
    %144 = vmatpush1.bf16.msra.mxu0 0
    %145 = vmatprep.subr.bf16.mxu0 0
    %146 = vmatpush1.bf16.msra.mxu0 0
    %147 = vmatprep.subr.bf16.mxu0 0
    %148 = vmatpush1.bf16.msra.mxu0 0
    %149 = vmatprep.subr.bf16.mxu0 0
    %150 = vmatpush1.bf16.msra.mxu0 0
    %151 = vmatprep.subr.bf16.mxu0 0
    %152 = vmatpush1.bf16.msra.mxu0 0
    %153 = vmatprep.subr.bf16.mxu0 0
    %154 = vmatpush1.bf16.msra.mxu0 %v134
    %155 = vmatprep.subr.bf16.mxu0 0
    %156 = vmatpush1.bf16.msra.mxu0 %v133
    %157 = vmatprep.subr.bf16.mxu0 0
    %158 = vmatpush2.bf16.msra.mxu0 0
    %159 = vmatprep.subr.bf16.mxu0 0
    %160 = vmatpush2.bf16.msra.mxu0 0
    %161 = vmatprep.subr.bf16.mxu0 0
    %162 = vmatpush2.bf16.msra.mxu0 0
    %163 = vmatprep.subr.bf16.mxu0 0
    %164 = vmatpush2.bf16.msra.mxu0 0
    %165 = vmatprep.subr.bf16.mxu0 0
    %166 = vmatpush2.bf16.msra.mxu0 0
    %167 = vmatprep.subr.bf16.mxu0 0
    %168 = vmatpush2.bf16.msra.mxu0 0
    %169 = vmatprep.subr.bf16.mxu0 0
    %170 = vmatpush2.bf16.msra.mxu0 0
    %171 = vmatprep.subr.bf16.mxu0 0
    %172 = vmatpush2.bf16.msra.mxu0 0
    %173 = vmatprep.mubr.bf16.mxu0 0
    %174 = vmatmul.mubr.bf16.gmra.mxu0 %v139
    %v175 = vpop.f32.mrf.mxu0
    %v176 = vadd.f32 %v123, %v175
    %v177 = vpop.f32.mrf.mxu0
    %v178 = vpop.f32.mrf.mxu0
    %v179 = vadd.f32 %v123, %v178
    %v180 = vpop.f32.mrf.mxu0
    %181 = vdwg.mxu0
    %s182 = scalar_lea.vmem %s3, 16
    %v183 = vld [vmem:[%s182] sm:$0xf]
    %v184 = vld [vmem:[%s182 + $0x4] sm:$0xf]
    %v185 = vld [vmem:[%s182 + $0x8] sm:$0xf]
    %v186 = vld [vmem:[%s182 + $0xc] sm:$0xf]
    %s187 = scalar_lea.vmem %s7, 1
    %v188 = vld [vmem:[%s187] sm:$0x1]
    %v190 = vlaneseq
    %v191 = vshrl.u32 %v190, 7
    %v192 = vsub.s32 0, %v191
    %v193 = vrot.slane %v188, %v192
    %v199 = vunpack.c.l.b16 %v183
    %v200 = vunpack.c.l.b16 %v184
    %v201 = vunpack.c.l.b16 %v185
    %v202 = vunpack.c.l.b16 %v186
    %v203 = vpack.c.b16 %v200, %v199
    %v204 = vpack.c.b16 %v202, %v201
    %207 = vmatprep.subr.bf16.mxu0 0
    %208 = vmatpush1.bf16.msra.mxu0 0
    %209 = vmatprep.subr.bf16.mxu0 0
    %210 = vmatpush1.bf16.msra.mxu0 0
    %211 = vmatprep.subr.bf16.mxu0 0
    %212 = vmatpush1.bf16.msra.mxu0 0
    %213 = vmatprep.subr.bf16.mxu0 0
    %214 = vmatpush1.bf16.msra.mxu0 0
    %215 = vmatprep.subr.bf16.mxu0 0
    %216 = vmatpush1.bf16.msra.mxu0 0
    %217 = vmatprep.subr.bf16.mxu0 0
    %218 = vmatpush1.bf16.msra.mxu0 0
    %219 = vmatprep.subr.bf16.mxu0 0
    %220 = vmatpush1.bf16.msra.mxu0 %v204
    %221 = vmatprep.subr.bf16.mxu0 0
    %222 = vmatpush1.bf16.msra.mxu0 %v203
    %223 = vmatprep.subr.bf16.mxu0 0
    %224 = vmatpush2.bf16.msra.mxu0 0
    %225 = vmatprep.subr.bf16.mxu0 0
    %226 = vmatpush2.bf16.msra.mxu0 0
    %227 = vmatprep.subr.bf16.mxu0 0
    %228 = vmatpush2.bf16.msra.mxu0 0
    %229 = vmatprep.subr.bf16.mxu0 0
    %230 = vmatpush2.bf16.msra.mxu0 0
    %231 = vmatprep.subr.bf16.mxu0 0
    %232 = vmatpush2.bf16.msra.mxu0 0
    %233 = vmatprep.subr.bf16.mxu0 0
    %234 = vmatpush2.bf16.msra.mxu0 0
    %235 = vmatprep.subr.bf16.mxu0 0
    %236 = vmatpush2.bf16.msra.mxu0 0
    %237 = vmatprep.subr.bf16.mxu0 0
    %238 = vmatpush2.bf16.msra.mxu0 0
    %239 = vmatprep.mubr.bf16.mxu0 0
    %240 = vmatmul.mubr.bf16.gmra.mxu0 %v139
    %v241 = vpop.f32.mrf.mxu0
    %v242 = vadd.f32 %v193, %v241
    %v243 = vpop.f32.mrf.mxu0
    %v244 = vpop.f32.mrf.mxu0
    %v245 = vadd.f32 %v193, %v244
    %v246 = vpop.f32.mrf.mxu0
    %247 = vdwg.mxu0
    %s248 = scalar_lea.vmem %s3, 32
    %v249 = vld [vmem:[%s248] sm:$0xf]
    %v250 = vld [vmem:[%s248 + $0x4] sm:$0xf]
    %v251 = vld [vmem:[%s248 + $0x8] sm:$0xf]
    %v252 = vld [vmem:[%s248 + $0xc] sm:$0xf]
    %s253 = scalar_lea.vmem %s7, 2
    %v254 = vld [vmem:[%s253] sm:$0x1]
    %v256 = vlaneseq
    %v257 = vshrl.u32 %v256, 7
    %v258 = vsub.s32 0, %v257
    %v259 = vrot.slane %v254, %v258
    %v265 = vunpack.c.l.b16 %v249
    %v266 = vunpack.c.l.b16 %v250
    %v267 = vunpack.c.l.b16 %v251
    %v268 = vunpack.c.l.b16 %v252
    %v269 = vpack.c.b16 %v266, %v265
    %v270 = vpack.c.b16 %v268, %v267
    %v274 = vsel %vm137, %v113, 0
    %276 = vmatprep.subr.bf16.mxu0 0
    %277 = vmatpush1.bf16.msra.mxu0 0
    %278 = vmatprep.subr.bf16.mxu0 0
    %279 = vmatpush1.bf16.msra.mxu0 0
    %280 = vmatprep.subr.bf16.mxu0 0
    %281 = vmatpush1.bf16.msra.mxu0 0
    %282 = vmatprep.subr.bf16.mxu0 0
    %283 = vmatpush1.bf16.msra.mxu0 0
    %284 = vmatprep.subr.bf16.mxu0 0
    %285 = vmatpush1.bf16.msra.mxu0 0
    %286 = vmatprep.subr.bf16.mxu0 0
    %287 = vmatpush1.bf16.msra.mxu0 0
    %288 = vmatprep.subr.bf16.mxu0 0
    %289 = vmatpush1.bf16.msra.mxu0 %v270
    %290 = vmatprep.subr.bf16.mxu0 0
    %291 = vmatpush1.bf16.msra.mxu0 %v269
    %292 = vmatprep.subr.bf16.mxu0 0
    %293 = vmatpush2.bf16.msra.mxu0 0
    %294 = vmatprep.subr.bf16.mxu0 0
    %295 = vmatpush2.bf16.msra.mxu0 0
    %296 = vmatprep.subr.bf16.mxu0 0
    %297 = vmatpush2.bf16.msra.mxu0 0
    %298 = vmatprep.subr.bf16.mxu0 0
    %299 = vmatpush2.bf16.msra.mxu0 0
    %300 = vmatprep.subr.bf16.mxu0 0
    %301 = vmatpush2.bf16.msra.mxu0 0
    %302 = vmatprep.subr.bf16.mxu0 0
    %303 = vmatpush2.bf16.msra.mxu0 0
    %304 = vmatprep.subr.bf16.mxu0 0
    %305 = vmatpush2.bf16.msra.mxu0 0
    %306 = vmatprep.subr.bf16.mxu0 0
    %307 = vmatpush2.bf16.msra.mxu0 0
    %308 = vmatprep.mubr.bf16.mxu0 0
    %309 = vmatmul.mubr.bf16.gmra.mxu0 %v274
    %v310 = vpop.f32.mrf.mxu0
    %v311 = vadd.f32 %v259, %v310
    %v312 = vpop.f32.mrf.mxu0
    %v313 = vpop.f32.mrf.mxu0
    %v314 = vadd.f32 %v259, %v313
    %v315 = vpop.f32.mrf.mxu0
    %316 = vdwg.mxu0
    %v317 = vmul.f32 %v176, 0.35355338
    %v318 = vmul.f32 %v179, 0.35355338
    %v319 = vpack.c.bf16 %v317, %v317
    %v320 = vpack.c.bf16 %v318, %v318
    %v321 = vpack.c.bf16 %v242, %v242
    %v322 = vpack.c.bf16 %v245, %v245
    %v323 = vpack.c.bf16 %v311, %v311
    %v324 = vpack.c.bf16 %v314, %v314
    %vm325 = vcmask 64512
    %v327 = vsel %vm325, %v319, 0
    %v330 = vsel %vm325, %v321, 0
    %332 = vmatprep.subr.bf16.mxu0 0
    %333 = vmatpush1.bf16.xpose.msra.mxu0 0
    %334 = vmatprep.subr.bf16.mxu0 0
    %335 = vmatpush1.bf16.xpose.msra.mxu0 0
    %336 = vmatprep.subr.bf16.mxu0 0
    %337 = vmatpush1.bf16.xpose.msra.mxu0 0
    %338 = vmatprep.subr.bf16.mxu0 0
    %339 = vmatpush1.bf16.xpose.msra.mxu0 0
    %340 = vmatprep.subr.bf16.mxu0 0
    %341 = vmatpush1.bf16.xpose.msra.mxu0 0
    %342 = vmatprep.subr.bf16.mxu0 0
    %343 = vmatpush1.bf16.xpose.msra.mxu0 0
    %344 = vmatprep.subr.bf16.mxu0 0
    %345 = vmatpush1.bf16.xpose.msra.mxu0 0
    %346 = vmatprep.subr.bf16.mxu0 0
    %347 = vmatpush1.bf16.xpose.msra.mxu0 %v330
    %348 = vmatprep.subr.bf16.mxu0 0
    %349 = vmatpush2.bf16.xpose.msra.mxu0 0
    %350 = vmatprep.subr.bf16.mxu0 0
    %351 = vmatpush2.bf16.xpose.msra.mxu0 0
    %352 = vmatprep.subr.bf16.mxu0 0
    %353 = vmatpush2.bf16.xpose.msra.mxu0 0
    %354 = vmatprep.subr.bf16.mxu0 0
    %355 = vmatpush2.bf16.xpose.msra.mxu0 0
    %356 = vmatprep.subr.bf16.mxu0 0
    %357 = vmatpush2.bf16.xpose.msra.mxu0 0
    %358 = vmatprep.subr.bf16.mxu0 0
    %359 = vmatpush2.bf16.xpose.msra.mxu0 0
    %360 = vmatprep.subr.bf16.mxu0 0
    %361 = vmatpush2.bf16.xpose.msra.mxu0 0
    %362 = vmatprep.subr.bf16.mxu0 0
    %363 = vmatpush2.bf16.xpose.msra.mxu0 0
    %364 = vmatprep.mubr.bf16.mxu0 0
    %365 = vmatmul.mubr.bf16.gmra.mxu0 %v327
    %v366 = vpop.f32.mrf.mxu0
    %v367 = vadd.f32 0.0, %v366
    %v368 = vpop.f32.mrf.mxu0
    %v369 = vpop.f32.mrf.mxu0
    %v370 = vpop.f32.mrf.mxu0
    %371 = vdwg.mxu0
    %v373 = vsel %vm325, %v320, 0
    %v376 = vsel %vm325, %v322, 0
    %378 = vmatprep.subr.bf16.mxu0 0
    %379 = vmatpush1.bf16.xpose.msra.mxu0 0
    %380 = vmatprep.subr.bf16.mxu0 0
    %381 = vmatpush1.bf16.xpose.msra.mxu0 0
    %382 = vmatprep.subr.bf16.mxu0 0
    %383 = vmatpush1.bf16.xpose.msra.mxu0 0
    %384 = vmatprep.subr.bf16.mxu0 0
    %385 = vmatpush1.bf16.xpose.msra.mxu0 0
    %386 = vmatprep.subr.bf16.mxu0 0
    %387 = vmatpush1.bf16.xpose.msra.mxu0 0
    %388 = vmatprep.subr.bf16.mxu0 0
    %389 = vmatpush1.bf16.xpose.msra.mxu0 0
    %390 = vmatprep.subr.bf16.mxu0 0
    %391 = vmatpush1.bf16.xpose.msra.mxu0 0
    %392 = vmatprep.subr.bf16.mxu0 0
    %393 = vmatpush1.bf16.xpose.msra.mxu0 %v376
    %394 = vmatprep.subr.bf16.mxu0 0
    %395 = vmatpush2.bf16.xpose.msra.mxu0 0
    %396 = vmatprep.subr.bf16.mxu0 0
    %397 = vmatpush2.bf16.xpose.msra.mxu0 0
    %398 = vmatprep.subr.bf16.mxu0 0
    %399 = vmatpush2.bf16.xpose.msra.mxu0 0
    %400 = vmatprep.subr.bf16.mxu0 0
    %401 = vmatpush2.bf16.xpose.msra.mxu0 0
    %402 = vmatprep.subr.bf16.mxu0 0
    %403 = vmatpush2.bf16.xpose.msra.mxu0 0
    %404 = vmatprep.subr.bf16.mxu0 0
    %405 = vmatpush2.bf16.xpose.msra.mxu0 0
    %406 = vmatprep.subr.bf16.mxu0 0
    %407 = vmatpush2.bf16.xpose.msra.mxu0 0
    %408 = vmatprep.subr.bf16.mxu0 0
    %409 = vmatpush2.bf16.xpose.msra.mxu0 0
    %410 = vmatprep.mubr.bf16.mxu0 0
    %411 = vmatmul.mubr.bf16.gmra.mxu0 %v373
    %v412 = vpop.f32.mrf.mxu0
    %v413 = vadd.f32 0.0, %v412
    %v414 = vpop.f32.mrf.mxu0
    %v415 = vpop.f32.mrf.mxu0
    %v416 = vpop.f32.mrf.mxu0
    %417 = vdwg.mxu0
    %v418 = vsel %vm325, %v367, -inf
    %419 = vmax.xlane.f32.xlu0 %v418
    %v420 = vpop.xlane.xlu0 %419
    %v421 = vsel %vm325, %v413, -inf
    %422 = vmax.xlane.f32.xlu0 %v421
    %v423 = vpop.xlane.xlu0 %422
    %v424 = vsub.f32 %v367, %v420
    %v425 = vsub.f32 %v413, %v423
    %v426 = vmul.f32 %v424, 1.442695
    %v427 = vpow.pop %v426
    %v428 = vmul.f32 %v425, 1.442695
    %v429 = vpow.pop %v428
    %v430 = vsel %vm325, %v427, 0.0
    %431 = vadd.xlane.f32.xlu0 %v430
    %v432 = vpop.xlane.xlu0 %431
    %v433 = vsel %vm325, %v429, 0.0
    %434 = vadd.xlane.f32.xlu0 %v433
    %v435 = vpop.xlane.xlu0 %434
    %v436 = vrcp.pop %v432
    %v437 = vrcp.pop %v435
    %v438 = vmul.f32 %v427, %v436
    %v439 = vmul.f32 %v429, %v437
    %v440 = vpack.c.bf16 %v438, %v438
    %v441 = vpack.c.bf16 %v439, %v439
    %v443 = vsel %vm325, %v440, 0
    %vm445 = vcmask 1043456
    %v447 = vsel %vm445, %v323, 0
    %449 = vmatprep.subr.bf16.mxu0 0
    %450 = vmatpush1.bf16.msra.mxu0 0
    %451 = vmatprep.subr.bf16.mxu0 0
    %452 = vmatpush1.bf16.msra.mxu0 0
    %453 = vmatprep.subr.bf16.mxu0 0
    %454 = vmatpush1.bf16.msra.mxu0 0
    %455 = vmatprep.subr.bf16.mxu0 0
    %456 = vmatpush1.bf16.msra.mxu0 0
    %457 = vmatprep.subr.bf16.mxu0 0
    %458 = vmatpush1.bf16.msra.mxu0 0
    %459 = vmatprep.subr.bf16.mxu0 0
    %460 = vmatpush1.bf16.msra.mxu0 0
    %461 = vmatprep.subr.bf16.mxu0 0
    %462 = vmatpush1.bf16.msra.mxu0 0
    %463 = vmatprep.subr.bf16.mxu0 0
    %464 = vmatpush1.bf16.msra.mxu0 %v447
    %465 = vmatprep.subr.bf16.mxu0 0
    %466 = vmatpush2.bf16.msra.mxu0 0
    %467 = vmatprep.subr.bf16.mxu0 0
    %468 = vmatpush2.bf16.msra.mxu0 0
    %469 = vmatprep.subr.bf16.mxu0 0
    %470 = vmatpush2.bf16.msra.mxu0 0
    %471 = vmatprep.subr.bf16.mxu0 0
    %472 = vmatpush2.bf16.msra.mxu0 0
    %473 = vmatprep.subr.bf16.mxu0 0
    %474 = vmatpush2.bf16.msra.mxu0 0
    %475 = vmatprep.subr.bf16.mxu0 0
    %476 = vmatpush2.bf16.msra.mxu0 0
    %477 = vmatprep.subr.bf16.mxu0 0
    %478 = vmatpush2.bf16.msra.mxu0 0
    %479 = vmatprep.subr.bf16.mxu0 0
    %480 = vmatpush2.bf16.msra.mxu0 0
    %481 = vmatprep.mubr.bf16.mxu0 0
    %482 = vmatmul.mubr.bf16.gmra.mxu0 %v443
    %v483 = vpop.f32.mrf.mxu0
    %v484 = vadd.f32 0.0, %v483
    %v485 = vpop.f32.mrf.mxu0
    %v486 = vpop.f32.mrf.mxu0
    %v487 = vpop.f32.mrf.mxu0
    %488 = vdwg.mxu0
    %v490 = vsel %vm325, %v441, 0
    %v493 = vsel %vm445, %v324, 0
    %495 = vmatprep.subr.bf16.mxu0 0
    %496 = vmatpush1.bf16.msra.mxu0 0
    %497 = vmatprep.subr.bf16.mxu0 0
    %498 = vmatpush1.bf16.msra.mxu0 0
    %499 = vmatprep.subr.bf16.mxu0 0
    %500 = vmatpush1.bf16.msra.mxu0 0
    %501 = vmatprep.subr.bf16.mxu0 0
    %502 = vmatpush1.bf16.msra.mxu0 0
    %503 = vmatprep.subr.bf16.mxu0 0
    %504 = vmatpush1.bf16.msra.mxu0 0
    %505 = vmatprep.subr.bf16.mxu0 0
    %506 = vmatpush1.bf16.msra.mxu0 0
    %507 = vmatprep.subr.bf16.mxu0 0
    %508 = vmatpush1.bf16.msra.mxu0 0
    %509 = vmatprep.subr.bf16.mxu0 0
    %510 = vmatpush1.bf16.msra.mxu0 %v493
    %511 = vmatprep.subr.bf16.mxu0 0
    %512 = vmatpush2.bf16.msra.mxu0 0
    %513 = vmatprep.subr.bf16.mxu0 0
    %514 = vmatpush2.bf16.msra.mxu0 0
    %515 = vmatprep.subr.bf16.mxu0 0
    %516 = vmatpush2.bf16.msra.mxu0 0
    %517 = vmatprep.subr.bf16.mxu0 0
    %518 = vmatpush2.bf16.msra.mxu0 0
    %519 = vmatprep.subr.bf16.mxu0 0
    %520 = vmatpush2.bf16.msra.mxu0 0
    %521 = vmatprep.subr.bf16.mxu0 0
    %522 = vmatpush2.bf16.msra.mxu0 0
    %523 = vmatprep.subr.bf16.mxu0 0
    %524 = vmatpush2.bf16.msra.mxu0 0
    %525 = vmatprep.subr.bf16.mxu0 0
    %526 = vmatpush2.bf16.msra.mxu0 0
    %527 = vmatprep.mubr.bf16.mxu0 0
    %528 = vmatmul.mubr.bf16.gmra.mxu0 %v490
    %v529 = vpop.f32.mrf.mxu0
    %v530 = vadd.f32 0.0, %v529
    %v531 = vpop.f32.mrf.mxu0
    %v532 = vpop.f32.mrf.mxu0
    %v533 = vpop.f32.mrf.mxu0
    %534 = vdwg.mxu0
    %v535 = vpack.c.bf16 %v530, %v484
    %v536 = vld [vmem:[#allocation8] sm:$0xf]
    %538 = vrot.lane.b32.xlu0 %v319, 120
    %v539 = vpop.permute.xlu0 %538
    %541 = vrot.lane.b32.xlu0 %v321, 120
    %v542 = vpop.permute.xlu0 %541
    %v544 = vsel %vm325, %v539, 0
    %v547 = vsel %vm325, %v542, 0
    %549 = vmatprep.subr.bf16.mxu0 0
    %550 = vmatpush1.bf16.xpose.msra.mxu0 0
    %551 = vmatprep.subr.bf16.mxu0 0
    %552 = vmatpush1.bf16.xpose.msra.mxu0 0
    %553 = vmatprep.subr.bf16.mxu0 0
    %554 = vmatpush1.bf16.xpose.msra.mxu0 0
    %555 = vmatprep.subr.bf16.mxu0 0
    %556 = vmatpush1.bf16.xpose.msra.mxu0 0
    %557 = vmatprep.subr.bf16.mxu0 0
    %558 = vmatpush1.bf16.xpose.msra.mxu0 0
    %559 = vmatprep.subr.bf16.mxu0 0
    %560 = vmatpush1.bf16.xpose.msra.mxu0 0
    %561 = vmatprep.subr.bf16.mxu0 0
    %562 = vmatpush1.bf16.xpose.msra.mxu0 0
    %563 = vmatprep.subr.bf16.mxu0 0
    %564 = vmatpush1.bf16.xpose.msra.mxu0 %v547
    %565 = vmatprep.subr.bf16.mxu0 0
    %566 = vmatpush2.bf16.xpose.msra.mxu0 0
    %567 = vmatprep.subr.bf16.mxu0 0
    %568 = vmatpush2.bf16.xpose.msra.mxu0 0
    %569 = vmatprep.subr.bf16.mxu0 0
    %570 = vmatpush2.bf16.xpose.msra.mxu0 0
    %571 = vmatprep.subr.bf16.mxu0 0
    %572 = vmatpush2.bf16.xpose.msra.mxu0 0
    %573 = vmatprep.subr.bf16.mxu0 0
    %574 = vmatpush2.bf16.xpose.msra.mxu0 0
    %575 = vmatprep.subr.bf16.mxu0 0
    %576 = vmatpush2.bf16.xpose.msra.mxu0 0
    %577 = vmatprep.subr.bf16.mxu0 0
    %578 = vmatpush2.bf16.xpose.msra.mxu0 0
    %579 = vmatprep.subr.bf16.mxu0 0
    %580 = vmatpush2.bf16.xpose.msra.mxu0 0
    %581 = vmatprep.mubr.bf16.mxu0 0
    %582 = vmatmul.mubr.bf16.gmra.mxu0 %v544
    %v583 = vpop.f32.mrf.mxu0
    %v584 = vadd.f32 0.0, %v583
    %v585 = vpop.f32.mrf.mxu0
    %v586 = vpop.f32.mrf.mxu0
    %v587 = vpop.f32.mrf.mxu0
    %588 = vdwg.mxu0
    %590 = vrot.lane.b32.xlu0 %v320, 120
    %v591 = vpop.permute.xlu0 %590
    %593 = vrot.lane.b32.xlu0 %v322, 120
    %v594 = vpop.permute.xlu0 %593
    %v596 = vsel %vm325, %v591, 0
    %v599 = vsel %vm325, %v594, 0
    %601 = vmatprep.subr.bf16.mxu0 0
    %602 = vmatpush1.bf16.xpose.msra.mxu0 0
    %603 = vmatprep.subr.bf16.mxu0 0
    %604 = vmatpush1.bf16.xpose.msra.mxu0 0
    %605 = vmatprep.subr.bf16.mxu0 0
    %606 = vmatpush1.bf16.xpose.msra.mxu0 0
    %607 = vmatprep.subr.bf16.mxu0 0
    %608 = vmatpush1.bf16.xpose.msra.mxu0 0
    %609 = vmatprep.subr.bf16.mxu0 0
    %610 = vmatpush1.bf16.xpose.msra.mxu0 0
    %611 = vmatprep.subr.bf16.mxu0 0
    %612 = vmatpush1.bf16.xpose.msra.mxu0 0
    %613 = vmatprep.subr.bf16.mxu0 0
    %614 = vmatpush1.bf16.xpose.msra.mxu0 0
    %615 = vmatprep.subr.bf16.mxu0 0
    %616 = vmatpush1.bf16.xpose.msra.mxu0 %v599
    %617 = vmatprep.subr.bf16.mxu0 0
    %618 = vmatpush2.bf16.xpose.msra.mxu0 0
    %619 = vmatprep.subr.bf16.mxu0 0
    %620 = vmatpush2.bf16.xpose.msra.mxu0 0
    %621 = vmatprep.subr.bf16.mxu0 0
    %622 = vmatpush2.bf16.xpose.msra.mxu0 0
    %623 = vmatprep.subr.bf16.mxu0 0
    %624 = vmatpush2.bf16.xpose.msra.mxu0 0
    %625 = vmatprep.subr.bf16.mxu0 0
    %626 = vmatpush2.bf16.xpose.msra.mxu0 0
    %627 = vmatprep.subr.bf16.mxu0 0
    %628 = vmatpush2.bf16.xpose.msra.mxu0 0
    %629 = vmatprep.subr.bf16.mxu0 0
    %630 = vmatpush2.bf16.xpose.msra.mxu0 0
    %631 = vmatprep.subr.bf16.mxu0 0
    %632 = vmatpush2.bf16.xpose.msra.mxu0 0
    %633 = vmatprep.mubr.bf16.mxu0 0
    %634 = vmatmul.mubr.bf16.gmra.mxu0 %v596
    %v635 = vpop.f32.mrf.mxu0
    %v636 = vadd.f32 0.0, %v635
    %v637 = vpop.f32.mrf.mxu0
    %v638 = vpop.f32.mrf.mxu0
    %v639 = vpop.f32.mrf.mxu0
    %640 = vdwg.mxu0
    %v641 = vsel %vm325, %v584, -inf
    %642 = vmax.xlane.f32.xlu0 %v641
    %v643 = vpop.xlane.xlu0 %642
    %v644 = vsel %vm325, %v636, -inf
    %645 = vmax.xlane.f32.xlu0 %v644
    %v646 = vpop.xlane.xlu0 %645
    %v647 = vsub.f32 %v584, %v643
    %v648 = vsub.f32 %v636, %v646
    %v649 = vmul.f32 %v647, 1.442695
    %v650 = vpow.pop %v649
    %v651 = vmul.f32 %v648, 1.442695
    %v652 = vpow.pop %v651
    %v653 = vsel %vm325, %v650, 0.0
    %654 = vadd.xlane.f32.xlu0 %v653
    %v655 = vpop.xlane.xlu0 %654
    %v656 = vsel %vm325, %v652, 0.0
    %657 = vadd.xlane.f32.xlu0 %v656
    %v658 = vpop.xlane.xlu0 %657
    %v659 = vrcp.pop %v655
    %v660 = vrcp.pop %v658
    %v661 = vmul.f32 %v650, %v659
    %v662 = vmul.f32 %v652, %v660
    %v663 = vpack.c.bf16 %v661, %v661
    %v664 = vpack.c.bf16 %v662, %v662
    %666 = vrot.lane.b32.xlu0 %v323, 120
    %v667 = vpop.permute.xlu0 %666
    %v669 = vsel %vm325, %v663, 0
    %v672 = vsel %vm445, %v667, 0
    %674 = vmatprep.subr.bf16.mxu0 0
    %675 = vmatpush1.bf16.msra.mxu0 0
    %676 = vmatprep.subr.bf16.mxu0 0
    %677 = vmatpush1.bf16.msra.mxu0 0
    %678 = vmatprep.subr.bf16.mxu0 0
    %679 = vmatpush1.bf16.msra.mxu0 0
    %680 = vmatprep.subr.bf16.mxu0 0
    %681 = vmatpush1.bf16.msra.mxu0 0
    %682 = vmatprep.subr.bf16.mxu0 0
    %683 = vmatpush1.bf16.msra.mxu0 0
    %684 = vmatprep.subr.bf16.mxu0 0
    %685 = vmatpush1.bf16.msra.mxu0 0
    %686 = vmatprep.subr.bf16.mxu0 0
    %687 = vmatpush1.bf16.msra.mxu0 0
    %688 = vmatprep.subr.bf16.mxu0 0
    %689 = vmatpush1.bf16.msra.mxu0 %v672
    %690 = vmatprep.subr.bf16.mxu0 0
    %691 = vmatpush2.bf16.msra.mxu0 0
    %692 = vmatprep.subr.bf16.mxu0 0
    %693 = vmatpush2.bf16.msra.mxu0 0
    %694 = vmatprep.subr.bf16.mxu0 0
    %695 = vmatpush2.bf16.msra.mxu0 0
    %696 = vmatprep.subr.bf16.mxu0 0
    %697 = vmatpush2.bf16.msra.mxu0 0
    %698 = vmatprep.subr.bf16.mxu0 0
    %699 = vmatpush2.bf16.msra.mxu0 0
    %700 = vmatprep.subr.bf16.mxu0 0
    %701 = vmatpush2.bf16.msra.mxu0 0
    %702 = vmatprep.subr.bf16.mxu0 0
    %703 = vmatpush2.bf16.msra.mxu0 0
    %704 = vmatprep.subr.bf16.mxu0 0
    %705 = vmatpush2.bf16.msra.mxu0 0
    %706 = vmatprep.mubr.bf16.mxu0 0
    %707 = vmatmul.mubr.bf16.gmra.mxu0 %v669
    %v708 = vpop.f32.mrf.mxu0
    %v709 = vadd.f32 0.0, %v708
    %v710 = vpop.f32.mrf.mxu0
    %v711 = vpop.f32.mrf.mxu0
    %v712 = vpop.f32.mrf.mxu0
    %713 = vdwg.mxu0
    %715 = vrot.lane.b32.xlu0 %v324, 120
    %v716 = vpop.permute.xlu0 %715
    %v718 = vsel %vm325, %v664, 0
    %v721 = vsel %vm445, %v716, 0
    %723 = vmatprep.subr.bf16.mxu0 0
    %724 = vmatpush1.bf16.msra.mxu0 0
    %725 = vmatprep.subr.bf16.mxu0 0
    %726 = vmatpush1.bf16.msra.mxu0 0
    %727 = vmatprep.subr.bf16.mxu0 0
    %728 = vmatpush1.bf16.msra.mxu0 0
    %729 = vmatprep.subr.bf16.mxu0 0
    %730 = vmatpush1.bf16.msra.mxu0 0
    %731 = vmatprep.subr.bf16.mxu0 0
    %732 = vmatpush1.bf16.msra.mxu0 0
    %733 = vmatprep.subr.bf16.mxu0 0
    %734 = vmatpush1.bf16.msra.mxu0 0
    %735 = vmatprep.subr.bf16.mxu0 0
    %736 = vmatpush1.bf16.msra.mxu0 0
    %737 = vmatprep.subr.bf16.mxu0 0
    %738 = vmatpush1.bf16.msra.mxu0 %v721
    %739 = vmatprep.subr.bf16.mxu0 0
    %740 = vmatpush2.bf16.msra.mxu0 0
    %741 = vmatprep.subr.bf16.mxu0 0
    %742 = vmatpush2.bf16.msra.mxu0 0
    %743 = vmatprep.subr.bf16.mxu0 0
    %744 = vmatpush2.bf16.msra.mxu0 0
    %745 = vmatprep.subr.bf16.mxu0 0
    %746 = vmatpush2.bf16.msra.mxu0 0
    %747 = vmatprep.subr.bf16.mxu0 0
    %748 = vmatpush2.bf16.msra.mxu0 0
    %749 = vmatprep.subr.bf16.mxu0 0
    %750 = vmatpush2.bf16.msra.mxu0 0
    %751 = vmatprep.subr.bf16.mxu0 0
    %752 = vmatpush2.bf16.msra.mxu0 0
    %753 = vmatprep.subr.bf16.mxu0 0
    %754 = vmatpush2.bf16.msra.mxu0 0
    %755 = vmatprep.mubr.bf16.mxu0 0
    %756 = vmatmul.mubr.bf16.gmra.mxu0 %v718
    %v757 = vpop.f32.mrf.mxu0
    %v758 = vadd.f32 0.0, %v757
    %v759 = vpop.f32.mrf.mxu0
    %v760 = vpop.f32.mrf.mxu0
    %v761 = vpop.f32.mrf.mxu0
    %762 = vdwg.mxu0
    %v763 = vpack.c.bf16 %v758, %v709
    %s764 = scalar_lea.vmem [#allocation8], 4
    %v765 = vld [vmem:[%s764] sm:$0xf]
    %v767 = vsel %vm325, %v763, 0
    %v770 = vsel %vm445, %v765, 0
    %772 = vmatprep.subr.bf16.mxu0 0
    %773 = vmatpush1.bf16.msra.mxu0 0
    %774 = vmatprep.subr.bf16.mxu0 0
    %775 = vmatpush1.bf16.msra.mxu0 0
    %776 = vmatprep.subr.bf16.mxu0 0
    %777 = vmatpush1.bf16.msra.mxu0 0
    %778 = vmatprep.subr.bf16.mxu0 0
    %779 = vmatpush1.bf16.msra.mxu0 0
    %780 = vmatprep.subr.bf16.mxu0 0
    %781 = vmatpush1.bf16.msra.mxu0 0
    %782 = vmatprep.subr.bf16.mxu0 0
    %783 = vmatpush1.bf16.msra.mxu0 0
    %784 = vmatprep.subr.bf16.mxu0 0
    %785 = vmatpush1.bf16.msra.mxu0 0
    %786 = vmatprep.subr.bf16.mxu0 0
    %787 = vmatpush1.bf16.msra.mxu0 %v770
    %788 = vmatprep.subr.bf16.mxu0 0
    %789 = vmatpush2.bf16.msra.mxu0 0
    %790 = vmatprep.subr.bf16.mxu0 0
    %791 = vmatpush2.bf16.msra.mxu0 0
    %792 = vmatprep.subr.bf16.mxu0 0
    %793 = vmatpush2.bf16.msra.mxu0 0
    %794 = vmatprep.subr.bf16.mxu0 0
    %795 = vmatpush2.bf16.msra.mxu0 0
    %796 = vmatprep.subr.bf16.mxu0 0
    %797 = vmatpush2.bf16.msra.mxu0 0
    %798 = vmatprep.subr.bf16.mxu0 0
    %799 = vmatpush2.bf16.msra.mxu0 0
    %800 = vmatprep.subr.bf16.mxu0 0
    %801 = vmatpush2.bf16.msra.mxu0 0
    %802 = vmatprep.subr.bf16.mxu0 0
    %803 = vmatpush2.bf16.msra.mxu0 0
    %804 = vmatprep.mubr.bf16.mxu0 0
    %805 = vmatmul.mubr.bf16.gmra.mxu0 %v767
    %v806 = vpop.f32.mrf.mxu0
    %v807 = vadd.f32 0.0, %v806
    %v808 = vpop.f32.mrf.mxu0
    %v809 = vpop.f32.mrf.mxu0
    %v810 = vadd.f32 0.0, %v809
    %v811 = vpop.f32.mrf.mxu0
    %812 = vdwg.mxu0
    %v814 = vsel %vm325, %v535, 0
    %v817 = vsel %vm445, %v536, 0
    %819 = vmatprep.subr.bf16.mxu0 0
    %820 = vmatpush1.bf16.msra.mxu0 0
    %821 = vmatprep.subr.bf16.mxu0 0
    %822 = vmatpush1.bf16.msra.mxu0 0
    %823 = vmatprep.subr.bf16.mxu0 0
    %824 = vmatpush1.bf16.msra.mxu0 0
    %825 = vmatprep.subr.bf16.mxu0 0
    %826 = vmatpush1.bf16.msra.mxu0 0
    %827 = vmatprep.subr.bf16.mxu0 0
    %828 = vmatpush1.bf16.msra.mxu0 0
    %829 = vmatprep.subr.bf16.mxu0 0
    %830 = vmatpush1.bf16.msra.mxu0 0
    %831 = vmatprep.subr.bf16.mxu0 0
    %832 = vmatpush1.bf16.msra.mxu0 0
    %833 = vmatprep.subr.bf16.mxu0 0
    %834 = vmatpush1.bf16.msra.mxu0 %v817
    %835 = vmatprep.subr.bf16.mxu0 0
    %836 = vmatpush2.bf16.msra.mxu0 0
    %837 = vmatprep.subr.bf16.mxu0 0
    %838 = vmatpush2.bf16.msra.mxu0 0
    %839 = vmatprep.subr.bf16.mxu0 0
    %840 = vmatpush2.bf16.msra.mxu0 0
    %841 = vmatprep.subr.bf16.mxu0 0
    %842 = vmatpush2.bf16.msra.mxu0 0
    %843 = vmatprep.subr.bf16.mxu0 0
    %844 = vmatpush2.bf16.msra.mxu0 0
    %845 = vmatprep.subr.bf16.mxu0 0
    %846 = vmatpush2.bf16.msra.mxu0 0
    %847 = vmatprep.subr.bf16.mxu0 0
    %848 = vmatpush2.bf16.msra.mxu0 0
    %849 = vmatprep.subr.bf16.mxu0 0
    %850 = vmatpush2.bf16.msra.mxu0 0
    %851 = vmatprep.mubr.bf16.mxu0 0
    %852 = vmatmul.mubr.bf16.gmra.mxu0 %v814
    %v853 = vpop.f32.mrf.mxu0
    %v854 = vadd.f32 %v807, %v853
    %v855 = vpop.f32.mrf.mxu0
    %v856 = vpop.f32.mrf.mxu0
    %v857 = vadd.f32 %v810, %v856
    %v858 = vpop.f32.mrf.mxu0
    %859 = vdwg.mxu0
    %860 = vrot.lane.b32.xlu0 %v319, 112
    %v861 = vpop.permute.xlu0 %860
    %862 = vrot.lane.b32.xlu0 %v321, 112
    %v863 = vpop.permute.xlu0 %862
    %v865 = vsel %vm325, %v861, 0
    %v868 = vsel %vm325, %v863, 0
    %870 = vmatprep.subr.bf16.mxu0 0
    %871 = vmatpush1.bf16.xpose.msra.mxu0 0
    %872 = vmatprep.subr.bf16.mxu0 0
    %873 = vmatpush1.bf16.xpose.msra.mxu0 0
    %874 = vmatprep.subr.bf16.mxu0 0
    %875 = vmatpush1.bf16.xpose.msra.mxu0 0
    %876 = vmatprep.subr.bf16.mxu0 0
    %877 = vmatpush1.bf16.xpose.msra.mxu0 0
    %878 = vmatprep.subr.bf16.mxu0 0
    %879 = vmatpush1.bf16.xpose.msra.mxu0 0
    %880 = vmatprep.subr.bf16.mxu0 0
    %881 = vmatpush1.bf16.xpose.msra.mxu0 0
    %882 = vmatprep.subr.bf16.mxu0 0
    %883 = vmatpush1.bf16.xpose.msra.mxu0 0
    %884 = vmatprep.subr.bf16.mxu0 0
    %885 = vmatpush1.bf16.xpose.msra.mxu0 %v868
    %886 = vmatprep.subr.bf16.mxu0 0
    %887 = vmatpush2.bf16.xpose.msra.mxu0 0
    %888 = vmatprep.subr.bf16.mxu0 0
    %889 = vmatpush2.bf16.xpose.msra.mxu0 0
    %890 = vmatprep.subr.bf16.mxu0 0
    %891 = vmatpush2.bf16.xpose.msra.mxu0 0
    %892 = vmatprep.subr.bf16.mxu0 0
    %893 = vmatpush2.bf16.xpose.msra.mxu0 0
    %894 = vmatprep.subr.bf16.mxu0 0
    %895 = vmatpush2.bf16.xpose.msra.mxu0 0
    %896 = vmatprep.subr.bf16.mxu0 0
    %897 = vmatpush2.bf16.xpose.msra.mxu0 0
    %898 = vmatprep.subr.bf16.mxu0 0
    %899 = vmatpush2.bf16.xpose.msra.mxu0 0
    %900 = vmatprep.subr.bf16.mxu0 0
    %901 = vmatpush2.bf16.xpose.msra.mxu0 0
    %902 = vmatprep.mubr.bf16.mxu0 0
    %903 = vmatmul.mubr.bf16.gmra.mxu0 %v865
    %v904 = vpop.f32.mrf.mxu0
    %v905 = vadd.f32 0.0, %v904
    %v906 = vpop.f32.mrf.mxu0
    %v907 = vpop.f32.mrf.mxu0
    %v908 = vpop.f32.mrf.mxu0
    %909 = vdwg.mxu0
    %910 = vrot.lane.b32.xlu0 %v320, 112
    %v911 = vpop.permute.xlu0 %910
    %912 = vrot.lane.b32.xlu0 %v322, 112
    %v913 = vpop.permute.xlu0 %912
    %v915 = vsel %vm325, %v911, 0
    %v918 = vsel %vm325, %v913, 0
    %920 = vmatprep.subr.bf16.mxu0 0
    %921 = vmatpush1.bf16.xpose.msra.mxu0 0
    %922 = vmatprep.subr.bf16.mxu0 0
    %923 = vmatpush1.bf16.xpose.msra.mxu0 0
    %924 = vmatprep.subr.bf16.mxu0 0
    %925 = vmatpush1.bf16.xpose.msra.mxu0 0
    %926 = vmatprep.subr.bf16.mxu0 0
    %927 = vmatpush1.bf16.xpose.msra.mxu0 0
    %928 = vmatprep.subr.bf16.mxu0 0
    %929 = vmatpush1.bf16.xpose.msra.mxu0 0
    %930 = vmatprep.subr.bf16.mxu0 0
    %931 = vmatpush1.bf16.xpose.msra.mxu0 0
    %932 = vmatprep.subr.bf16.mxu0 0
    %933 = vmatpush1.bf16.xpose.msra.mxu0 0
    %934 = vmatprep.subr.bf16.mxu0 0
    %935 = vmatpush1.bf16.xpose.msra.mxu0 %v918
    %936 = vmatprep.subr.bf16.mxu0 0
    %937 = vmatpush2.bf16.xpose.msra.mxu0 0
    %938 = vmatprep.subr.bf16.mxu0 0
    %939 = vmatpush2.bf16.xpose.msra.mxu0 0
    %940 = vmatprep.subr.bf16.mxu0 0
    %941 = vmatpush2.bf16.xpose.msra.mxu0 0
    %942 = vmatprep.subr.bf16.mxu0 0
    %943 = vmatpush2.bf16.xpose.msra.mxu0 0
    %944 = vmatprep.subr.bf16.mxu0 0
    %945 = vmatpush2.bf16.xpose.msra.mxu0 0
    %946 = vmatprep.subr.bf16.mxu0 0
    %947 = vmatpush2.bf16.xpose.msra.mxu0 0
    %948 = vmatprep.subr.bf16.mxu0 0
    %949 = vmatpush2.bf16.xpose.msra.mxu0 0
    %950 = vmatprep.subr.bf16.mxu0 0
    %951 = vmatpush2.bf16.xpose.msra.mxu0 0
    %952 = vmatprep.mubr.bf16.mxu0 0
    %953 = vmatmul.mubr.bf16.gmra.mxu0 %v915
    %v954 = vpop.f32.mrf.mxu0
    %v955 = vadd.f32 0.0, %v954
    %v956 = vpop.f32.mrf.mxu0
    %v957 = vpop.f32.mrf.mxu0
    %v958 = vpop.f32.mrf.mxu0
    %959 = vdwg.mxu0
    %v960 = vsel %vm325, %v905, -inf
    %961 = vmax.xlane.f32.xlu0 %v960
    %v962 = vpop.xlane.xlu0 %961
    %v963 = vsel %vm325, %v955, -inf
    %964 = vmax.xlane.f32.xlu0 %v963
    %v965 = vpop.xlane.xlu0 %964
    %v966 = vsub.f32 %v905, %v962
    %v967 = vsub.f32 %v955, %v965
    %v968 = vmul.f32 %v966, 1.442695
    %v969 = vpow.pop %v968
    %v970 = vmul.f32 %v967, 1.442695
    %v971 = vpow.pop %v970
    %v972 = vsel %vm325, %v969, 0.0
    %973 = vadd.xlane.f32.xlu0 %v972
    %v974 = vpop.xlane.xlu0 %973
    %v975 = vsel %vm325, %v971, 0.0
    %976 = vadd.xlane.f32.xlu0 %v975
    %v977 = vpop.xlane.xlu0 %976
    %v978 = vrcp.pop %v974
    %v979 = vrcp.pop %v977
    %v980 = vmul.f32 %v969, %v978
    %v981 = vmul.f32 %v971, %v979
    %v982 = vpack.c.bf16 %v980, %v980
    %v983 = vpack.c.bf16 %v981, %v981
    %984 = vrot.lane.b32.xlu0 %v323, 112
    %v985 = vpop.permute.xlu0 %984
    %v987 = vsel %vm325, %v982, 0
    %v990 = vsel %vm445, %v985, 0
    %992 = vmatprep.subr.bf16.mxu0 0
    %993 = vmatpush1.bf16.msra.mxu0 0
    %994 = vmatprep.subr.bf16.mxu0 0
    %995 = vmatpush1.bf16.msra.mxu0 0
    %996 = vmatprep.subr.bf16.mxu0 0
    %997 = vmatpush1.bf16.msra.mxu0 0
    %998 = vmatprep.subr.bf16.mxu0 0
    %999 = vmatpush1.bf16.msra.mxu0 0
    %1000 = vmatprep.subr.bf16.mxu0 0
    %1001 = vmatpush1.bf16.msra.mxu0 0
    %1002 = vmatprep.subr.bf16.mxu0 0
    %1003 = vmatpush1.bf16.msra.mxu0 0
    %1004 = vmatprep.subr.bf16.mxu0 0
    %1005 = vmatpush1.bf16.msra.mxu0 0
    %1006 = vmatprep.subr.bf16.mxu0 0
    %1007 = vmatpush1.bf16.msra.mxu0 %v990
    %1008 = vmatprep.subr.bf16.mxu0 0
    %1009 = vmatpush2.bf16.msra.mxu0 0
    %1010 = vmatprep.subr.bf16.mxu0 0
    %1011 = vmatpush2.bf16.msra.mxu0 0
    %1012 = vmatprep.subr.bf16.mxu0 0
    %1013 = vmatpush2.bf16.msra.mxu0 0
    %1014 = vmatprep.subr.bf16.mxu0 0
    %1015 = vmatpush2.bf16.msra.mxu0 0
    %1016 = vmatprep.subr.bf16.mxu0 0
    %1017 = vmatpush2.bf16.msra.mxu0 0
    %1018 = vmatprep.subr.bf16.mxu0 0
    %1019 = vmatpush2.bf16.msra.mxu0 0
    %1020 = vmatprep.subr.bf16.mxu0 0
    %1021 = vmatpush2.bf16.msra.mxu0 0
    %1022 = vmatprep.subr.bf16.mxu0 0
    %1023 = vmatpush2.bf16.msra.mxu0 0
    %1024 = vmatprep.mubr.bf16.mxu0 0
    %1025 = vmatmul.mubr.bf16.gmra.mxu0 %v987
    %v1026 = vpop.f32.mrf.mxu0
    %v1027 = vadd.f32 0.0, %v1026
    %v1028 = vpop.f32.mrf.mxu0
    %v1029 = vpop.f32.mrf.mxu0
    %v1030 = vpop.f32.mrf.mxu0
    %1031 = vdwg.mxu0
    %1032 = vrot.lane.b32.xlu0 %v324, 112
    %v1033 = vpop.permute.xlu0 %1032
    %v1035 = vsel %vm325, %v983, 0
    %v1038 = vsel %vm445, %v1033, 0
    %1040 = vmatprep.subr.bf16.mxu0 0
    %1041 = vmatpush1.bf16.msra.mxu0 0
    %1042 = vmatprep.subr.bf16.mxu0 0
    %1043 = vmatpush1.bf16.msra.mxu0 0
    %1044 = vmatprep.subr.bf16.mxu0 0
    %1045 = vmatpush1.bf16.msra.mxu0 0
    %1046 = vmatprep.subr.bf16.mxu0 0
    %1047 = vmatpush1.bf16.msra.mxu0 0
    %1048 = vmatprep.subr.bf16.mxu0 0
    %1049 = vmatpush1.bf16.msra.mxu0 0
    %1050 = vmatprep.subr.bf16.mxu0 0
    %1051 = vmatpush1.bf16.msra.mxu0 0
    %1052 = vmatprep.subr.bf16.mxu0 0
    %1053 = vmatpush1.bf16.msra.mxu0 0
    %1054 = vmatprep.subr.bf16.mxu0 0
    %1055 = vmatpush1.bf16.msra.mxu0 %v1038
    %1056 = vmatprep.subr.bf16.mxu0 0
    %1057 = vmatpush2.bf16.msra.mxu0 0
    %1058 = vmatprep.subr.bf16.mxu0 0
    %1059 = vmatpush2.bf16.msra.mxu0 0
    %1060 = vmatprep.subr.bf16.mxu0 0
    %1061 = vmatpush2.bf16.msra.mxu0 0
    %1062 = vmatprep.subr.bf16.mxu0 0
    %1063 = vmatpush2.bf16.msra.mxu0 0
    %1064 = vmatprep.subr.bf16.mxu0 0
    %1065 = vmatpush2.bf16.msra.mxu0 0
    %1066 = vmatprep.subr.bf16.mxu0 0
    %1067 = vmatpush2.bf16.msra.mxu0 0
    %1068 = vmatprep.subr.bf16.mxu0 0
    %1069 = vmatpush2.bf16.msra.mxu0 0
    %1070 = vmatprep.subr.bf16.mxu0 0
    %1071 = vmatpush2.bf16.msra.mxu0 0
    %1072 = vmatprep.mubr.bf16.mxu0 0
    %1073 = vmatmul.mubr.bf16.gmra.mxu0 %v1035
    %v1074 = vpop.f32.mrf.mxu0
    %v1075 = vadd.f32 0.0, %v1074
    %v1076 = vpop.f32.mrf.mxu0
    %v1077 = vpop.f32.mrf.mxu0
    %v1078 = vpop.f32.mrf.mxu0
    %1079 = vdwg.mxu0
    %v1080 = vpack.c.bf16 %v1075, %v1027
    %s1081 = scalar_lea.vmem [#allocation8], 8
    %v1082 = vld [vmem:[%s1081] sm:$0xf]
    %v1084 = vsel %vm325, %v1080, 0
    %v1087 = vsel %vm445, %v1082, 0
    %1089 = vmatprep.subr.bf16.mxu0 0
    %1090 = vmatpush1.bf16.msra.mxu0 0
    %1091 = vmatprep.subr.bf16.mxu0 0
    %1092 = vmatpush1.bf16.msra.mxu0 0
    %1093 = vmatprep.subr.bf16.mxu0 0
    %1094 = vmatpush1.bf16.msra.mxu0 0
    %1095 = vmatprep.subr.bf16.mxu0 0
    %1096 = vmatpush1.bf16.msra.mxu0 0
    %1097 = vmatprep.subr.bf16.mxu0 0
    %1098 = vmatpush1.bf16.msra.mxu0 0
    %1099 = vmatprep.subr.bf16.mxu0 0
    %1100 = vmatpush1.bf16.msra.mxu0 0
    %1101 = vmatprep.subr.bf16.mxu0 0
    %1102 = vmatpush1.bf16.msra.mxu0 0
    %1103 = vmatprep.subr.bf16.mxu0 0
    %1104 = vmatpush1.bf16.msra.mxu0 %v1087
    %1105 = vmatprep.subr.bf16.mxu0 0
    %1106 = vmatpush2.bf16.msra.mxu0 0
    %1107 = vmatprep.subr.bf16.mxu0 0
    %1108 = vmatpush2.bf16.msra.mxu0 0
    %1109 = vmatprep.subr.bf16.mxu0 0
    %1110 = vmatpush2.bf16.msra.mxu0 0
    %1111 = vmatprep.subr.bf16.mxu0 0
    %1112 = vmatpush2.bf16.msra.mxu0 0
    %1113 = vmatprep.subr.bf16.mxu0 0
    %1114 = vmatpush2.bf16.msra.mxu0 0
    %1115 = vmatprep.subr.bf16.mxu0 0
    %1116 = vmatpush2.bf16.msra.mxu0 0
    %1117 = vmatprep.subr.bf16.mxu0 0
    %1118 = vmatpush2.bf16.msra.mxu0 0
    %1119 = vmatprep.subr.bf16.mxu0 0
    %1120 = vmatpush2.bf16.msra.mxu0 0
    %1121 = vmatprep.mubr.bf16.mxu0 0
    %1122 = vmatmul.mubr.bf16.gmra.mxu0 %v1084
    %v1123 = vpop.f32.mrf.mxu0
    %v1124 = vadd.f32 0.0, %v1123
    %v1125 = vpop.f32.mrf.mxu0
    %v1126 = vpop.f32.mrf.mxu0
    %v1127 = vadd.f32 0.0, %v1126
    %v1128 = vpop.f32.mrf.mxu0
    %1129 = vdwg.mxu0
    %v1130 = vadd.f32 %v854, %v1124
    %v1131 = vadd.f32 %v857, %v1127
    %1132 = vrot.lane.b32.xlu0 %v319, 104
    %v1133 = vpop.permute.xlu0 %1132
    %1134 = vrot.lane.b32.xlu0 %v321, 104
    %v1135 = vpop.permute.xlu0 %1134
    %v1137 = vsel %vm325, %v1133, 0
    %v1140 = vsel %vm325, %v1135, 0
    %1142 = vmatprep.subr.bf16.mxu0 0
    %1143 = vmatpush1.bf16.xpose.msra.mxu0 0
    %1144 = vmatprep.subr.bf16.mxu0 0
    %1145 = vmatpush1.bf16.xpose.msra.mxu0 0
    %1146 = vmatprep.subr.bf16.mxu0 0
    %1147 = vmatpush1.bf16.xpose.msra.mxu0 0
    %1148 = vmatprep.subr.bf16.mxu0 0
    %1149 = vmatpush1.bf16.xpose.msra.mxu0 0
    %1150 = vmatprep.subr.bf16.mxu0 0
    %1151 = vmatpush1.bf16.xpose.msra.mxu0 0
    %1152 = vmatprep.subr.bf16.mxu0 0
    %1153 = vmatpush1.bf16.xpose.msra.mxu0 0
    %1154 = vmatprep.subr.bf16.mxu0 0
    %1155 = vmatpush1.bf16.xpose.msra.mxu0 0
    %1156 = vmatprep.subr.bf16.mxu0 0
    %1157 = vmatpush1.bf16.xpose.msra.mxu0 %v1140
    %1158 = vmatprep.subr.bf16.mxu0 0
    %1159 = vmatpush2.bf16.xpose.msra.mxu0 0
    %1160 = vmatprep.subr.bf16.mxu0 0
    %1161 = vmatpush2.bf16.xpose.msra.mxu0 0
    %1162 = vmatprep.subr.bf16.mxu0 0
    %1163 = vmatpush2.bf16.xpose.msra.mxu0 0
    %1164 = vmatprep.subr.bf16.mxu0 0
    %1165 = vmatpush2.bf16.xpose.msra.mxu0 0
    %1166 = vmatprep.subr.bf16.mxu0 0
    %1167 = vmatpush2.bf16.xpose.msra.mxu0 0
    %1168 = vmatprep.subr.bf16.mxu0 0
    %1169 = vmatpush2.bf16.xpose.msra.mxu0 0
    %1170 = vmatprep.subr.bf16.mxu0 0
    %1171 = vmatpush2.bf16.xpose.msra.mxu0 0
    %1172 = vmatprep.subr.bf16.mxu0 0
    %1173 = vmatpush2.bf16.xpose.msra.mxu0 0
    %1174 = vmatprep.mubr.bf16.mxu0 0
    %1175 = vmatmul.mubr.bf16.gmra.mxu0 %v1137
    %v1176 = vpop.f32.mrf.mxu0
    %v1177 = vadd.f32 0.0, %v1176
    %v1178 = vpop.f32.mrf.mxu0
    %v1179 = vpop.f32.mrf.mxu0
    %v1180 = vpop.f32.mrf.mxu0
    %1181 = vdwg.mxu0
    %1182 = vrot.lane.b32.xlu0 %v320, 104
    %v1183 = vpop.permute.xlu0 %1182
    %1184 = vrot.lane.b32.xlu0 %v322, 104
    %v1185 = vpop.permute.xlu0 %1184
    %v1187 = vsel %vm325, %v1183, 0
    %v1190 = vsel %vm325, %v1185, 0
    %1192 = vmatprep.subr.bf16.mxu0 0
    %1193 = vmatpush1.bf16.xpose.msra.mxu0 0
    %1194 = vmatprep.subr.bf16.mxu0 0
    %1195 = vmatpush1.bf16.xpose.msra.mxu0 0
    %1196 = vmatprep.subr.bf16.mxu0 0
    %1197 = vmatpush1.bf16.xpose.msra.mxu0 0
    %1198 = vmatprep.subr.bf16.mxu0 0
    %1199 = vmatpush1.bf16.xpose.msra.mxu0 0
    %1200 = vmatprep.subr.bf16.mxu0 0
    %1201 = vmatpush1.bf16.xpose.msra.mxu0 0
    %1202 = vmatprep.subr.bf16.mxu0 0
    %1203 = vmatpush1.bf16.xpose.msra.mxu0 0
    %1204 = vmatprep.subr.bf16.mxu0 0
    %1205 = vmatpush1.bf16.xpose.msra.mxu0 0
    %1206 = vmatprep.subr.bf16.mxu0 0
    %1207 = vmatpush1.bf16.xpose.msra.mxu0 %v1190
    %1208 = vmatprep.subr.bf16.mxu0 0
    %1209 = vmatpush2.bf16.xpose.msra.mxu0 0
    %1210 = vmatprep.subr.bf16.mxu0 0
    %1211 = vmatpush2.bf16.xpose.msra.mxu0 0
    %1212 = vmatprep.subr.bf16.mxu0 0
    %1213 = vmatpush2.bf16.xpose.msra.mxu0 0
    %1214 = vmatprep.subr.bf16.mxu0 0
    %1215 = vmatpush2.bf16.xpose.msra.mxu0 0
    %1216 = vmatprep.subr.bf16.mxu0 0
    %1217 = vmatpush2.bf16.xpose.msra.mxu0 0
    %1218 = vmatprep.subr.bf16.mxu0 0
    %1219 = vmatpush2.bf16.xpose.msra.mxu0 0
    %1220 = vmatprep.subr.bf16.mxu0 0
    %1221 = vmatpush2.bf16.xpose.msra.mxu0 0
    %1222 = vmatprep.subr.bf16.mxu0 0
    %1223 = vmatpush2.bf16.xpose.msra.mxu0 0
    %1224 = vmatprep.mubr.bf16.mxu0 0
    %1225 = vmatmul.mubr.bf16.gmra.mxu0 %v1187
    %v1226 = vpop.f32.mrf.mxu0
    %v1227 = vadd.f32 0.0, %v1226
    %v1228 = vpop.f32.mrf.mxu0
    %v1229 = vpop.f32.mrf.mxu0
    %v1230 = vpop.f32.mrf.mxu0
    %1231 = vdwg.mxu0
    %v1232 = vsel %vm325, %v1177, -inf
    %1233 = vmax.xlane.f32.xlu0 %v1232
    %v1234 = vpop.xlane.xlu0 %1233
    %v1235 = vsel %vm325, %v1227, -inf
    %1236 = vmax.xlane.f32.xlu0 %v1235
    %v1237 = vpop.xlane.xlu0 %1236
    %v1238 = vsub.f32 %v1177, %v1234
    %v1239 = vsub.f32 %v1227, %v1237
    %v1240 = vmul.f32 %v1238, 1.442695
    %v1241 = vpow.pop %v1240
    %v1242 = vmul.f32 %v1239, 1.442695
    %v1243 = vpow.pop %v1242
    %v1244 = vsel %vm325, %v1241, 0.0
    %1245 = vadd.xlane.f32.xlu0 %v1244
    %v1246 = vpop.xlane.xlu0 %1245
    %v1247 = vsel %vm325, %v1243, 0.0
    %1248 = vadd.xlane.f32.xlu0 %v1247
    %v1249 = vpop.xlane.xlu0 %1248
    %v1250 = vrcp.pop %v1246
    %v1251 = vrcp.pop %v1249
    %v1252 = vmul.f32 %v1241, %v1250
    %v1253 = vmul.f32 %v1243, %v1251
    %v1254 = vpack.c.bf16 %v1252, %v1252
    %v1255 = vpack.c.bf16 %v1253, %v1253
    %1256 = vrot.lane.b32.xlu0 %v323, 104
    %v1257 = vpop.permute.xlu0 %1256
    %v1259 = vsel %vm325, %v1254, 0
    %v1262 = vsel %vm445, %v1257, 0
    %1264 = vmatprep.subr.bf16.mxu0 0
    %1265 = vmatpush1.bf16.msra.mxu0 0
    %1266 = vmatprep.subr.bf16.mxu0 0
    %1267 = vmatpush1.bf16.msra.mxu0 0
    %1268 = vmatprep.subr.bf16.mxu0 0
    %1269 = vmatpush1.bf16.msra.mxu0 0
    %1270 = vmatprep.subr.bf16.mxu0 0
    %1271 = vmatpush1.bf16.msra.mxu0 0
    %1272 = vmatprep.subr.bf16.mxu0 0
    %1273 = vmatpush1.bf16.msra.mxu0 0
    %1274 = vmatprep.subr.bf16.mxu0 0
    %1275 = vmatpush1.bf16.msra.mxu0 0
    %1276 = vmatprep.subr.bf16.mxu0 0
    %1277 = vmatpush1.bf16.msra.mxu0 0
    %1278 = vmatprep.subr.bf16.mxu0 0
    %1279 = vmatpush1.bf16.msra.mxu0 %v1262
    %1280 = vmatprep.subr.bf16.mxu0 0
    %1281 = vmatpush2.bf16.msra.mxu0 0
    %1282 = vmatprep.subr.bf16.mxu0 0
    %1283 = vmatpush2.bf16.msra.mxu0 0
    %1284 = vmatprep.subr.bf16.mxu0 0
    %1285 = vmatpush2.bf16.msra.mxu0 0
    %1286 = vmatprep.subr.bf16.mxu0 0
    %1287 = vmatpush2.bf16.msra.mxu0 0
    %1288 = vmatprep.subr.bf16.mxu0 0
    %1289 = vmatpush2.bf16.msra.mxu0 0
    %1290 = vmatprep.subr.bf16.mxu0 0
    %1291 = vmatpush2.bf16.msra.mxu0 0
    %1292 = vmatprep.subr.bf16.mxu0 0
    %1293 = vmatpush2.bf16.msra.mxu0 0
    %1294 = vmatprep.subr.bf16.mxu0 0
    %1295 = vmatpush2.bf16.msra.mxu0 0
    %1296 = vmatprep.mubr.bf16.mxu0 0
    %1297 = vmatmul.mubr.bf16.gmra.mxu0 %v1259
    %v1298 = vpop.f32.mrf.mxu0
    %v1299 = vadd.f32 0.0, %v1298
    %v1300 = vpop.f32.mrf.mxu0
    %v1301 = vpop.f32.mrf.mxu0
    %v1302 = vpop.f32.mrf.mxu0
    %1303 = vdwg.mxu0
    %1304 = vrot.lane.b32.xlu0 %v324, 104
    %v1305 = vpop.permute.xlu0 %1304
    %v1307 = vsel %vm325, %v1255, 0
    %v1310 = vsel %vm445, %v1305, 0
    %1312 = vmatprep.subr.bf16.mxu0 0
    %1313 = vmatpush1.bf16.msra.mxu0 0
    %1314 = vmatprep.subr.bf16.mxu0 0
    %1315 = vmatpush1.bf16.msra.mxu0 0
    %1316 = vmatprep.subr.bf16.mxu0 0
    %1317 = vmatpush1.bf16.msra.mxu0 0
    %1318 = vmatprep.subr.bf16.mxu0 0
    %1319 = vmatpush1.bf16.msra.mxu0 0
    %1320 = vmatprep.subr.bf16.mxu0 0
    %1321 = vmatpush1.bf16.msra.mxu0 0
    %1322 = vmatprep.subr.bf16.mxu0 0
    %1323 = vmatpush1.bf16.msra.mxu0 0
    %1324 = vmatprep.subr.bf16.mxu0 0
    %1325 = vmatpush1.bf16.msra.mxu0 0
    %1326 = vmatprep.subr.bf16.mxu0 0
    %1327 = vmatpush1.bf16.msra.mxu0 %v1310
    %1328 = vmatprep.subr.bf16.mxu0 0
    %1329 = vmatpush2.bf16.msra.mxu0 0
    %1330 = vmatprep.subr.bf16.mxu0 0
    %1331 = vmatpush2.bf16.msra.mxu0 0
    %1332 = vmatprep.subr.bf16.mxu0 0
    %1333 = vmatpush2.bf16.msra.mxu0 0
    %1334 = vmatprep.subr.bf16.mxu0 0
    %1335 = vmatpush2.bf16.msra.mxu0 0
    %1336 = vmatprep.subr.bf16.mxu0 0
    %1337 = vmatpush2.bf16.msra.mxu0 0
    %1338 = vmatprep.subr.bf16.mxu0 0
    %1339 = vmatpush2.bf16.msra.mxu0 0
    %1340 = vmatprep.subr.bf16.mxu0 0
    %1341 = vmatpush2.bf16.msra.mxu0 0
    %1342 = vmatprep.subr.bf16.mxu0 0
    %1343 = vmatpush2.bf16.msra.mxu0 0
    %1344 = vmatprep.mubr.bf16.mxu0 0
    %1345 = vmatmul.mubr.bf16.gmra.mxu0 %v1307
    %v1346 = vpop.f32.mrf.mxu0
    %v1347 = vadd.f32 0.0, %v1346
    %v1348 = vpop.f32.mrf.mxu0
    %v1349 = vpop.f32.mrf.mxu0
    %v1350 = vpop.f32.mrf.mxu0
    %1351 = vdwg.mxu0
    %v1352 = vpack.c.bf16 %v1347, %v1299
    %s1353 = scalar_lea.vmem [#allocation8], 12
    %v1354 = vld [vmem:[%s1353] sm:$0xf]
    %v1356 = vsel %vm325, %v1352, 0
    %v1359 = vsel %vm445, %v1354, 0
    %1361 = vmatprep.subr.bf16.mxu0 0
    %1362 = vmatpush1.bf16.msra.mxu0 0
    %1363 = vmatprep.subr.bf16.mxu0 0
    %1364 = vmatpush1.bf16.msra.mxu0 0
    %1365 = vmatprep.subr.bf16.mxu0 0
    %1366 = vmatpush1.bf16.msra.mxu0 0
    %1367 = vmatprep.subr.bf16.mxu0 0
    %1368 = vmatpush1.bf16.msra.mxu0 0
    %1369 = vmatprep.subr.bf16.mxu0 0
    %1370 = vmatpush1.bf16.msra.mxu0 0
    %1371 = vmatprep.subr.bf16.mxu0 0
    %1372 = vmatpush1.bf16.msra.mxu0 0
    %1373 = vmatprep.subr.bf16.mxu0 0
    %1374 = vmatpush1.bf16.msra.mxu0 0
    %1375 = vmatprep.subr.bf16.mxu0 0
    %1376 = vmatpush1.bf16.msra.mxu0 %v1359
    %1377 = vmatprep.subr.bf16.mxu0 0
    %1378 = vmatpush2.bf16.msra.mxu0 0
    %1379 = vmatprep.subr.bf16.mxu0 0
    %1380 = vmatpush2.bf16.msra.mxu0 0
    %1381 = vmatprep.subr.bf16.mxu0 0
    %1382 = vmatpush2.bf16.msra.mxu0 0
    %1383 = vmatprep.subr.bf16.mxu0 0
    %1384 = vmatpush2.bf16.msra.mxu0 0
    %1385 = vmatprep.subr.bf16.mxu0 0
    %1386 = vmatpush2.bf16.msra.mxu0 0
    %1387 = vmatprep.subr.bf16.mxu0 0
    %1388 = vmatpush2.bf16.msra.mxu0 0
    %1389 = vmatprep.subr.bf16.mxu0 0
    %1390 = vmatpush2.bf16.msra.mxu0 0
    %1391 = vmatprep.subr.bf16.mxu0 0
    %1392 = vmatpush2.bf16.msra.mxu0 0
    %1393 = vmatprep.mubr.bf16.mxu0 0
    %1394 = vmatmul.mubr.bf16.gmra.mxu0 %v1356
    %v1395 = vpop.f32.mrf.mxu0
    %v1396 = vadd.f32 0.0, %v1395
    %v1397 = vpop.f32.mrf.mxu0
    %v1398 = vpop.f32.mrf.mxu0
    %v1399 = vadd.f32 0.0, %v1398
    %v1400 = vpop.f32.mrf.mxu0
    %1401 = vdwg.mxu0
    %v1402 = vadd.f32 %v1130, %v1396
    %v1403 = vadd.f32 %v1131, %v1399
    %s1404 = scalar_lea.vmem %s7, 3
    %v1405 = vld [vmem:[%s1404] sm:$0x1]
    %v1407 = vlaneseq
    %v1408 = vshrl.u32 %v1407, 7
    %v1409 = vsub.s32 0, %v1408
    %v1410 = vrot.slane %v1405, %v1409
    %v1412 = vadd.f32 %v1402, %v1410
    %v1413 = vadd.f32 %v1403, %v1410
    %v1414 = vadd.f32 %v110, %v1412
    %v1415 = vadd.f32 %v111, %v1413
    %s1416 = scalar_lea.vmem %s7, 5
    %v1417 = vld [vmem:[%s1416] sm:$0x1]
    %s1418 = scalar_lea.vmem %s7, 6
    %v1419 = vld [vmem:[%s1418] sm:$0x1]
    %v1420 = vsel %vm137, %v1414, 0.0
    %1421 = vadd.xlane.f32.xlu0 %v1420
    %v1422 = vpop.xlane.xlu0 %1421
    %v1423 = vsel %vm137, %v1415, 0.0
    %1424 = vadd.xlane.f32.xlu0 %v1423
    %v1425 = vpop.xlane.xlu0 %1424
    %v1426 = vrcp.pop 32.0
    %v1427 = vmul.f32 %v1422, %v1426
    %v1428 = vmul.f32 %v1425, %v1426
    %v1429 = vsub.f32 %v1414, %v1427
    %v1430 = vsub.f32 %v1415, %v1428
    %v1431 = vmul.f32 %v1429, %v1429
    %v1432 = vmul.f32 %v1430, %v1430
    %v1433 = vsel %vm137, %v1431, 0.0
    %1434 = vadd.xlane.f32.xlu0 %v1433
    %v1435 = vpop.xlane.xlu0 %1434
    %v1436 = vsel %vm137, %v1432, 0.0
    %1437 = vadd.xlane.f32.xlu0 %v1436
    %v1438 = vpop.xlane.xlu0 %1437
    %v1439 = vmul.f32 %v1435, %v1426
    %v1440 = vmul.f32 %v1438, %v1426
    %v1441 = vadd.f32 %v1439, 1e-05
    %v1442 = vadd.f32 %v1440, 1e-05
    %v1443 = vrsqrt.pop %v1441
    %v1444 = vrsqrt.pop %v1442
    %v1445 = vmul.f32 %v1429, %v1443
    %v1446 = vmul.f32 %v1430, %v1444
    %v1448 = vlaneseq
    %v1449 = vshrl.u32 %v1448, 7
    %v1450 = vsub.s32 0, %v1449
    %v1451 = vrot.slane %v1417, %v1450
    %v1453 = vmul.f32 %v1445, %v1451
    %v1454 = vmul.f32 %v1446, %v1451
    %v1456 = vlaneseq
    %v1457 = vshrl.u32 %v1456, 7
    %v1458 = vsub.s32 0, %v1457
    %v1459 = vrot.slane %v1419, %v1458
    %v1461 = vadd.f32 %v1453, %v1459
    %v1462 = vadd.f32 %v1454, %v1459
    %v1463 = vpack.c.bf16 %v1462, %v1461
    %v1464 = vld [vmem:[#allocation10] sm:$0xf]
    %v1465 = vld [vmem:[#allocation10 + $0x4] sm:$0xf]
    %v1466 = vld [vmem:[#allocation10 + $0x8] sm:$0xf]
    %v1467 = vld [vmem:[#allocation10 + $0xc] sm:$0xf]
    %v1468 = vld [vmem:[%s8] sm:$0x1]
    %v1470 = vlaneseq
    %v1471 = vshrl.u32 %v1470, 7
    %v1472 = vsub.s32 0, %v1471
    %v1473 = vrot.slane %v1468, %v1472
    %v1479 = vunpack.c.l.b16 %v1464
    %v1480 = vunpack.c.l.b16 %v1465
    %v1481 = vunpack.c.l.b16 %v1466
    %v1482 = vunpack.c.l.b16 %v1467
    %v1483 = vpack.c.b16 %v1480, %v1479
    %v1484 = vpack.c.b16 %v1482, %v1481
    %v1488 = vsel %vm137, %v1463, 0
    %1490 = vmatprep.subr.bf16.mxu0 0
    %1491 = vmatpush1.bf16.msra.mxu0 0
    %1492 = vmatprep.subr.bf16.mxu0 0
    %1493 = vmatpush1.bf16.msra.mxu0 0
    %1494 = vmatprep.subr.bf16.mxu0 0
    %1495 = vmatpush1.bf16.msra.mxu0 0
    %1496 = vmatprep.subr.bf16.mxu0 0
    %1497 = vmatpush1.bf16.msra.mxu0 0
    %1498 = vmatprep.subr.bf16.mxu0 0
    %1499 = vmatpush1.bf16.msra.mxu0 0
    %1500 = vmatprep.subr.bf16.mxu0 0
    %1501 = vmatpush1.bf16.msra.mxu0 0
    %1502 = vmatprep.subr.bf16.mxu0 0
    %1503 = vmatpush1.bf16.msra.mxu0 %v1484
    %1504 = vmatprep.subr.bf16.mxu0 0
    %1505 = vmatpush1.bf16.msra.mxu0 %v1483
    %1506 = vmatprep.subr.bf16.mxu0 0
    %1507 = vmatpush2.bf16.msra.mxu0 0
    %1508 = vmatprep.subr.bf16.mxu0 0
    %1509 = vmatpush2.bf16.msra.mxu0 0
    %1510 = vmatprep.subr.bf16.mxu0 0
    %1511 = vmatpush2.bf16.msra.mxu0 0
    %1512 = vmatprep.subr.bf16.mxu0 0
    %1513 = vmatpush2.bf16.msra.mxu0 0
    %1514 = vmatprep.subr.bf16.mxu0 0
    %1515 = vmatpush2.bf16.msra.mxu0 0
    %1516 = vmatprep.subr.bf16.mxu0 0
    %1517 = vmatpush2.bf16.msra.mxu0 0
    %1518 = vmatprep.subr.bf16.mxu0 0
    %1519 = vmatpush2.bf16.msra.mxu0 0
    %1520 = vmatprep.subr.bf16.mxu0 0
    %1521 = vmatpush2.bf16.msra.mxu0 0
    %1522 = vmatprep.mubr.bf16.mxu0 0
    %1523 = vmatmul.mubr.bf16.gmra.mxu0 %v1488
    %v1524 = vpop.f32.mrf.mxu0
    %v1525 = vadd.f32 %v1473, %v1524
    %v1526 = vpop.f32.mrf.mxu0
    %v1527 = vpop.f32.mrf.mxu0
    %v1528 = vadd.f32 %v1473, %v1527
    %v1529 = vpop.f32.mrf.mxu0
    %1530 = vdwg.mxu0
    %v1531 = vmax.f32 %v1525, 0.0
    %v1532 = vmax.f32 %v1528, 0.0
    %v1533 = vpack.c.bf16 %v1532, %v1531
    %v1534 = vld [vmem:[%s6] sm:$0xf]
    %v1535 = vld [vmem:[%s6 + $0x4] sm:$0xf]
    %v1536 = vld [vmem:[%s6 + $0x8] sm:$0xf]
    %v1537 = vld [vmem:[%s6 + $0xc] sm:$0xf]
    %v1538 = vld [vmem:[%s6 + $0x10] sm:$0xf]
    %v1539 = vld [vmem:[%s6 + $0x14] sm:$0xf]
    %v1540 = vld [vmem:[%s6 + $0x18] sm:$0xf]
    %v1541 = vld [vmem:[%s6 + $0x1c] sm:$0xf]
    %s1542 = scalar_lea.vmem %s7, 4
    %v1543 = vld [vmem:[%s1542] sm:$0x1]
    %v1545 = vlaneseq
    %v1546 = vshrl.u32 %v1545, 7
    %v1547 = vsub.s32 0, %v1546
    %v1548 = vrot.slane %v1543, %v1547
    %v1558 = vunpack.c.l.b16 %v1534
    %v1559 = vunpack.c.l.b16 %v1535
    %v1560 = vunpack.c.l.b16 %v1536
    %v1561 = vunpack.c.l.b16 %v1537
    %v1562 = vunpack.c.l.b16 %v1538
    %v1563 = vunpack.c.l.b16 %v1539
    %v1564 = vunpack.c.l.b16 %v1540
    %v1565 = vunpack.c.l.b16 %v1541
    %v1566 = vpack.c.b16 %v1559, %v1558
    %v1567 = vpack.c.b16 %v1561, %v1560
    %v1568 = vpack.c.b16 %v1563, %v1562
    %v1569 = vpack.c.b16 %v1565, %v1564
    %vm1574 = vcmask 523264
    %v1576 = vsel %vm1574, %v1533, 0
    %1578 = vmatprep.subr.bf16.mxu0 0
    %1579 = vmatpush1.bf16.msra.mxu0 0
    %1580 = vmatprep.subr.bf16.mxu0 0
    %1581 = vmatpush1.bf16.msra.mxu0 0
    %1582 = vmatprep.subr.bf16.mxu0 0
    %1583 = vmatpush1.bf16.msra.mxu0 0
    %1584 = vmatprep.subr.bf16.mxu0 0
    %1585 = vmatpush1.bf16.msra.mxu0 0
    %1586 = vmatprep.subr.bf16.mxu0 0
    %1587 = vmatpush1.bf16.msra.mxu0 %v1569
    %1588 = vmatprep.subr.bf16.mxu0 0
    %1589 = vmatpush1.bf16.msra.mxu0 %v1568
    %1590 = vmatprep.subr.bf16.mxu0 0
    %1591 = vmatpush1.bf16.msra.mxu0 %v1567
    %1592 = vmatprep.subr.bf16.mxu0 0
    %1593 = vmatpush1.bf16.msra.mxu0 %v1566
    %1594 = vmatprep.subr.bf16.mxu0 0
    %1595 = vmatpush2.bf16.msra.mxu0 0
    %1596 = vmatprep.subr.bf16.mxu0 0
    %1597 = vmatpush2.bf16.msra.mxu0 0
    %1598 = vmatprep.subr.bf16.mxu0 0
    %1599 = vmatpush2.bf16.msra.mxu0 0
    %1600 = vmatprep.subr.bf16.mxu0 0
    %1601 = vmatpush2.bf16.msra.mxu0 0
    %1602 = vmatprep.subr.bf16.mxu0 0
    %1603 = vmatpush2.bf16.msra.mxu0 0
    %1604 = vmatprep.subr.bf16.mxu0 0
    %1605 = vmatpush2.bf16.msra.mxu0 0
    %1606 = vmatprep.subr.bf16.mxu0 0
    %1607 = vmatpush2.bf16.msra.mxu0 0
    %1608 = vmatprep.subr.bf16.mxu0 0
    %1609 = vmatpush2.bf16.msra.mxu0 0
    %1610 = vmatprep.mubr.bf16.mxu0 0
    %1611 = vmatmul.mubr.bf16.gmra.mxu0 %v1576
    %v1612 = vpop.f32.mrf.mxu0
    %v1613 = vadd.f32 %v1548, %v1612
    %v1614 = vpop.f32.mrf.mxu0
    %v1615 = vpop.f32.mrf.mxu0
    %v1616 = vadd.f32 %v1548, %v1615
    %v1617 = vpop.f32.mrf.mxu0
    %1618 = vdwg.mxu0
    %v1619 = vadd.f32 %v1461, %v1613
    %v1620 = vadd.f32 %v1462, %v1616
    %s1621 = scalar_lea.vmem %s7, 7
    %v1622 = vld [vmem:[%s1621] sm:$0x1]
    %s1623 = scalar_lea.vmem %s7, 8
    %v1624 = vld [vmem:[%s1623] sm:$0x1]
    %v1625 = vsel %vm137, %v1619, 0.0
    %1626 = vadd.xlane.f32.xlu0 %v1625
    %v1627 = vpop.xlane.xlu0 %1626
    %v1628 = vsel %vm137, %v1620, 0.0
    %1629 = vadd.xlane.f32.xlu0 %v1628
    %v1630 = vpop.xlane.xlu0 %1629
    %v1631 = vmul.f32 %v1627, %v1426
    %v1632 = vmul.f32 %v1630, %v1426
    %v1633 = vsub.f32 %v1619, %v1631
    %v1634 = vsub.f32 %v1620, %v1632
    %v1635 = vmul.f32 %v1633, %v1633
    %v1636 = vmul.f32 %v1634, %v1634
    %v1637 = vsel %vm137, %v1635, 0.0
    %1638 = vadd.xlane.f32.xlu0 %v1637
    %v1639 = vpop.xlane.xlu0 %1638
    %v1640 = vsel %vm137, %v1636, 0.0
    %1641 = vadd.xlane.f32.xlu0 %v1640
    %v1642 = vpop.xlane.xlu0 %1641
    %v1643 = vmul.f32 %v1639, %v1426
    %v1644 = vmul.f32 %v1642, %v1426
    %v1645 = vadd.f32 %v1643, 1e-05
    %v1646 = vadd.f32 %v1644, 1e-05
    %v1647 = vrsqrt.pop %v1645
    %v1648 = vrsqrt.pop %v1646
    %v1649 = vmul.f32 %v1633, %v1647
    %v1650 = vmul.f32 %v1634, %v1648
    %v1652 = vlaneseq
    %v1653 = vshrl.u32 %v1652, 7
    %v1654 = vsub.s32 0, %v1653
    %v1655 = vrot.slane %v1622, %v1654
    %v1657 = vmul.f32 %v1649, %v1655
    %v1658 = vmul.f32 %v1650, %v1655
    %v1660 = vlaneseq
    %v1661 = vshrl.u32 %v1660, 7
    %v1662 = vsub.s32 0, %v1661
    %v1663 = vrot.slane %v1624, %v1662
    %v1665 = vadd.f32 %v1657, %v1663
    %v1666 = vadd.f32 %v1658, %v1663
    %1667 = vst.msk [vmem:[#allocation11] sm:$0xff] %vm137, %v1665
    %1668 = vst.msk [vmem:[#allocation11 + $0x8] sm:$0xff] %vm137, %v1666
    // Predicated region
    $region58: #{tpu_custom_call.1} parent=1 // pred_check
      _
    $region59: #{tpu_custom_call.1} parent=1 // pred_check_branch
      %1670 = sbr.rel (0) target = $region61
    $region60: #{tpu_custom_call.1} parent=1 // pred_region
      %s1672 = ssub.s32 256, 256
      %1673 = vsyncadd [#allocation4], %s1672
      %s1674 = sshll.u32 [#allocation11], 4
      %s1675 = int_to_ptr.vmem [resolvable:$true] %s1674
      %1680 = dma.vmem_to_hbm [thread:$0]  %s1675, 256, %s9, [#allocation4], 128, 128, 8
    $region61: #{tpu_custom_call.1} parent=1 // pred_fallthru
      _
    // Predicated region
    $region62: #{tpu_custom_call.1} parent=1 // pred_check
      _
    $region63: #{tpu_custom_call.1} parent=1 // pred_check_branch
      %1682 = sbr.rel (0) target = $region65
    $region64: #{tpu_custom_call.1} parent=1 // pred_region
      %1683 = dma.done [#allocation4], 256
    $region65: #{tpu_custom_call.1} parent=1 // pred_fallthru
      _
    %1684 = vsyncpa [#allocation3], 1
    %1685 = vsyncpa [#allocation6], 1
    %1686 = vsyncpa [#allocation9], 1
    %1687 = vsyncpa [#allocation4], 1

</llo_original>
